<compile_context>
chip_gen: v7x
topology: tpu7x:2x2x1
jax: 0.10.0
libtpu: 0.0.40
codegen_flags: <defaults>
</compile_context>

<pallas_src>
import functools

import numpy as np
import jax
import jax.numpy as jnp
from jax.experimental import pallas as pl
from jax.experimental.pallas import tpu as pltpu

HUMAN_SIZE = 54


# -----------------------------------------------------------------------------
# Pallas kernel: whole seq2seq forward (encoder roll-in + autoregressive decode)
# -----------------------------------------------------------------------------
def seq2seq_kernel(enc_ref, dec_ref, wih4_ref, gbias_ref, whh4_ref, wbig_ref,
                   sbias_ref, wfc_ref, bfc_ref, out_ref,
                   *, src_len, tgt_len, B, H):
    H2, H3, H4 = 2 * H, 3 * H, 4 * H

    def gru_gates(g, h):
        # 4H gate layout: [r | z | n_input | n_hidden]; all biases already in g.
        rz = jax.nn.sigmoid(g[:, :H2])
        r = rz[:, :H]
        z = rz[:, H:]
        n = jnp.tanh(g[:, H2:H3] + r * g[:, H3:])
        return (1.0 - z) * n + z * h

    # ---- preamble (independent of the recurrence; wih4 goes dead after this) ----
    wih4 = wih4_ref[...]                                    # (D, 4H)
    gbias = gbias_ref[...]                                  # (1, 4H)

    # encoder input projection, batched per sample: B small (S, D) @ (D, 4H) matmuls
    gi_b = [jnp.dot(enc_ref[b], wih4, preferred_element_type=jnp.float32) + gbias
            for b in range(B)]                              # each (S, 4H)

    # only decoder step 0 is ever consumed
    dec0 = jnp.concatenate([dec_ref[b][0:1, :] for b in range(B)], axis=0)   # (B, D)
    # s_t = inp_t @ W_in + gate_bias   (running input-side gate projection)
    s = jnp.dot(dec0, wih4, preferred_element_type=jnp.float32) + gbias      # (B, 4H)

    # ---- encoder recurrence: one (B,H) @ (H,4H) matmul per step -----------------
    whh4 = whh4_ref[...]                                    # (H, 4H)
    h = jnp.zeros((B, H), jnp.float32)
    for i in range(src_len - 1):                            # static -> fully unrolled
        gi = jnp.concatenate([gi_b[b][i:i + 1, :] for b in range(B)], axis=0)
        if i == 0:
            g = gi                                          # h == 0 -> skip the matmul
        else:
            g = gi + jnp.dot(h, whh4, preferred_element_type=jnp.float32)
        h = gru_gates(g, h)

    # ---- decoder recurrence: ONE (B,H) @ (H,8H) matmul per step -----------------
    # W_big = [W_hid | Wfc^T @ W_in]; first 4H cols -> gates, last 4H cols -> s update.
    wbig = wbig_ref[...]                                    # (H, 8H)
    sbias_b = jnp.broadcast_to(sbias_ref[...], (B, H4))     # b_fc @ W_in, hoisted
    hs = []
    for t in range(tgt_len):                                # static -> fully unrolled
        r_full = jnp.dot(h, wbig, preferred_element_type=jnp.float32)   # (B, 8H)
        if t > 0:
            # s_t = s_{t-1} + h_{t-1} @ (Wfc^T @ W_in) + b_fc @ W_in
            s = s + r_full[:, H4:] + sbias_b
        h = gru_gates(s + r_full[:, :H4], h)
        hs.append(h)                                        # feedback stays in vregs

    # ---- batched FC + residual cumulative sum, single lane-dense store ----------
    wfc = wfc_ref[...]                                      # (H, D)
    bfc = bfc_ref[...]                                      # (1, D)
    h_all = jnp.concatenate(hs, axis=0)                     # (T*B, H)
    fc_all = jnp.dot(h_all, wfc, preferred_element_type=jnp.float32) + bfc   # (T*B, D)
    run = dec0
    outs = []
    for t in range(tgt_len):
        run = run + fc_all[t * B:(t + 1) * B, :]            # out_t = out_{t-1} + fc_t
        outs.append(run)
    out_ref[...] = jnp.concatenate(outs, axis=1)            # (B, T*D): one 512-lane store


# -----------------------------------------------------------------------------
# Wrapper (glue): layout plumbing + pallas_call (no host-side transposes)
# -----------------------------------------------------------------------------
def seq2seq_forward(encoder_inputs, decoder_inputs, params):
    """encoder_inputs: (B, S, D); decoder_inputs: (B, T, D) -> (B, T, D)."""
    B, S, D = encoder_inputs.shape
    _, T, _ = decoder_inputs.shape
    H = params["whh4"].shape[0]

    kernel = functools.partial(seq2seq_kernel, src_len=S, tgt_len=T, B=B, H=H)

    out_flat = pl.pallas_call(
        kernel,
        out_shape=jax.ShapeDtypeStruct((B, T * D), jnp.float32),
        grid=(1,),
        in_specs=[
            pl.BlockSpec((B, S, D), lambda i: (0, 0, 0)),     # encoder inputs (raw)
            pl.BlockSpec((B, T, D), lambda i: (0, 0, 0)),     # decoder inputs (raw)
            pl.BlockSpec((D, 4 * H), lambda i: (0, 0)),       # W_in  (input gate proj)
            pl.BlockSpec((1, 4 * H), lambda i: (0, 0)),       # gate bias (r/z summed, n split)
            pl.BlockSpec((H, 4 * H), lambda i: (0, 0)),       # W_hid (hidden gate proj)
            pl.BlockSpec((H, 8 * H), lambda i: (0, 0)),       # W_big = [W_hid | Wfc^T@W_in]
            pl.BlockSpec((1, 4 * H), lambda i: (0, 0)),       # step bias = b_fc @ W_in
            pl.BlockSpec((H, D), lambda i: (0, 0)),           # fc1 W^T
            pl.BlockSpec((1, D), lambda i: (0, 0)),           # fc1 b
        ],
        out_specs=pl.BlockSpec((B, T * D), lambda i: (0, 0)),
        compiler_params=pltpu.CompilerParams(
            dimension_semantics=("arbitrary",)),
    )(encoder_inputs.astype(jnp.float32), decoder_inputs.astype(jnp.float32),
      params["wih4"], params["gbias"], params["whh4"], params["wbig"],
      params["sbias"], params["wfc_t"], params["bfc"])

    return out_flat.reshape(B, T, D)      # free reshape, no transpose


# -----------------------------------------------------------------------------
# Parameter init (PyTorch GRUCell(D,H) + Linear(H,D) shapes) + kernel packing
# -----------------------------------------------------------------------------
def init_raw_params(key, input_size, rnn_size):
    D, H = input_size, rnn_size
    ks = jax.random.split(key, 6)
    scale = 0.1
    return {
        "w_ih": scale * jax.random.normal(ks[0], (3 * H, D), jnp.float32),  # GRUCell.weight_ih
        "w_hh": scale * jax.random.normal(ks[1], (3 * H, H), jnp.float32),  # GRUCell.weight_hh
        "b_ih": scale * jax.random.normal(ks[2], (3 * H,), jnp.float32),
        "b_hh": scale * jax.random.normal(ks[3], (3 * H,), jnp.float32),
        "w_fc": scale * jax.random.normal(ks[4], (D, H), jnp.float32),      # fc1.weight
        "b_fc": scale * jax.random.normal(ks[5], (D,), jnp.float32),        # fc1.bias
    }


def pack_params(raw):
    w_ih, w_hh = raw["w_ih"], raw["w_hh"]          # (3H, D), (3H, H)
    b_ih, b_hh = raw["b_ih"], raw["b_hh"]
    w_fc, b_fc = raw["w_fc"], raw["b_fc"]          # (D, H), (D,)
    H = w_hh.shape[1]
    D = w_ih.shape[1]
    H2, H3, H4 = 2 * H, 3 * H, 4 * H
    wih_t = w_ih.T                                  # (D, 3H)
    whh_t = w_hh.T                                  # (H, 3H)
    wfc_t = w_fc.T                                  # (H, D)

    # 4H = 128-lane gate layout: [r | z | n_input | n_hidden]
    wih4 = jnp.zeros((D, H4), jnp.float32)
    wih4 = wih4.at[:, :H2].set(wih_t[:, :H2])
    wih4 = wih4.at[:, H2:H3].set(wih_t[:, H2:])
    whh4 = jnp.zeros((H, H4), jnp.float32)
    whh4 = whh4.at[:, :H2].set(whh_t[:, :H2])
    whh4 = whh4.at[:, H3:].set(whh_t[:, H2:])
    # r/z biases pre-summed; n-gate input/hidden biases kept in their own columns
    gbias = jnp.concatenate(
        [b_ih[:H2] + b_hh[:H2], b_ih[H2:], b_hh[H2:]]).reshape(1, H4)

    # Decoder single-matmul weight: W_big = [W_hid | Wfc^T @ W_in]   (H, 8H)
    wfc_in = wfc_t @ wih4                            # (H, 4H)
    wbig = jnp.concatenate([whh4, wfc_in], axis=1)   # (H, 8H)
    sbias = b_fc.reshape(1, D) @ wih4                # (1, 4H)  (b_fc projected into gate space)

    return {
        "wih4": wih4,
        "gbias": gbias,
        "whh4": whh4,
        "wbig": wbig,
        "sbias": sbias,
        "wfc_t": wfc_t,
        "bfc": b_fc.reshape(1, D),
    }


# -----------------------------------------------------------------------------
# Pure-JAX reference (mirrors the PyTorch loops, uses RAW PyTorch-form weights)
# -----------------------------------------------------------------------------
def seq2seq_reference(encoder_inputs, decoder_inputs, raw):
    B, S, D = encoder_inputs.shape
    _, T, _ = decoder_inputs.shape
    H = raw["w_hh"].shape[1]
    w_ih_t, w_hh_t = raw["w_ih"].T, raw["w_hh"].T
    b_ih, b_hh = raw["b_ih"], raw["b_hh"]
    w_fc_t, b_fc = raw["w_fc"].T, raw["b_fc"]

    def gru(x, h):
        gi = x @ w_ih_t + b_ih
        gh = h @ w_hh_t + b_hh
        r = jax.nn.sigmoid(gi[:, :H] + gh[:, :H])
        z = jax.nn.sigmoid(gi[:, H:2 * H] + gh[:, H:2 * H])
        n = jnp.tanh(gi[:, 2 * H:] + r * gh[:, 2 * H:])
        return (1.0 - z) * n + z * h

    h = jnp.zeros((B, H), jnp.float32)
    for i in range(S - 1):
        h = gru(encoder_inputs[:, i, :], h)

    outputs = []
    prev = None
    for i in range(T):
        inp = decoder_inputs[:, i, :] if prev is None else prev
        h = gru(inp, h)
        out = inp + h @ w_fc_t + b_fc
        outputs.append(out)
        prev = out
    return jnp.stack(outputs, axis=1)


if __name__ == "__main__":
    # Small shapes consistent with the module: HUMAN_SIZE=54, 10 actions -> D=64
    number_of_actions = 10
    input_size = HUMAN_SIZE + number_of_actions   # 64
    source_seq_len = 8
    target_seq_len = 8
    rnn_size = 32
    batch = 2
    # dropout = 0.0 -> F.dropout is the identity, so it is omitted in the kernel.

    key = jax.random.PRNGKey(0)
    kp, ke, kd = jax.random.split(key, 3)
    raw = init_raw_params(kp, input_size, rnn_size)
    params = pack_params(raw)
    encoder_inputs = jax.random.normal(ke, (batch, source_seq_len, input_size), jnp.float32)
    decoder_inputs = jax.random.normal(kd, (batch, target_seq_len, input_size), jnp.float32)

    out = seq2seq_forward(encoder_inputs, decoder_inputs, params)
    out = jax.block_until_ready(out)

    ref = seq2seq_reference(encoder_inputs, decoder_inputs, raw)
    assert out.shape == (batch, target_seq_len, input_size)
    np.testing.assert_allclose(np.asarray(out), np.asarray(ref), rtol=1e-4, atol=1e-4)

    print("KERNEL_OK")
</pallas_src>

<mosaic_0001>
module attributes {stable_mosaic.version = 11 : i64} {
  func.func @seq2seq_kernel(%arg0: i32, %arg1: memref<2x8x64xf32, #tpu.memory_space<vmem>>, %arg2: memref<2x8x64xf32, #tpu.memory_space<vmem>>, %arg3: memref<64x128xf32, #tpu.memory_space<vmem>>, %arg4: memref<1x128xf32, #tpu.memory_space<vmem>>, %arg5: memref<32x128xf32, #tpu.memory_space<vmem>>, %arg6: memref<32x256xf32, #tpu.memory_space<vmem>>, %arg7: memref<1x128xf32, #tpu.memory_space<vmem>>, %arg8: memref<32x64xf32, #tpu.memory_space<vmem>>, %arg9: memref<1x64xf32, #tpu.memory_space<vmem>>, %arg10: memref<2x512xf32, #tpu.memory_space<vmem>>) attributes {dimension_semantics = [#tpu.dimension_semantics<arbitrary>], iteration_bounds = array<i64: 1>, scalar_prefetch = 0 : i64, scratch_operands = 0 : i64, tpu.core_type = #tpu.core_type<tc>, window_params = [{pipeline_mode = #tpu.pipeline_mode<synchronous>, transform_indices = @transform_0, window_bounds = array<i64: 2, 8, 64>}, {pipeline_mode = #tpu.pipeline_mode<synchronous>, transform_indices = @transform_1, window_bounds = array<i64: 2, 8, 64>}, {pipeline_mode = #tpu.pipeline_mode<synchronous>, transform_indices = @transform_2, window_bounds = array<i64: 64, 128>}, {pipeline_mode = #tpu.pipeline_mode<synchronous>, transform_indices = @transform_3, window_bounds = array<i64: 1, 128>}, {pipeline_mode = #tpu.pipeline_mode<synchronous>, transform_indices = @transform_4, window_bounds = array<i64: 32, 128>}, {pipeline_mode = #tpu.pipeline_mode<synchronous>, transform_indices = @transform_5, window_bounds = array<i64: 32, 256>}, {pipeline_mode = #tpu.pipeline_mode<synchronous>, transform_indices = @transform_6, window_bounds = array<i64: 1, 128>}, {pipeline_mode = #tpu.pipeline_mode<synchronous>, transform_indices = @transform_7, window_bounds = array<i64: 32, 64>}, {pipeline_mode = #tpu.pipeline_mode<synchronous>, transform_indices = @transform_8, window_bounds = array<i64: 1, 64>}, {pipeline_mode = #tpu.pipeline_mode<synchronous>, transform_indices = @transform_9, window_bounds = array<i64: 2, 512>}]} {
    %c0 = arith.constant 0 : index
    %c0_0 = arith.constant 0 : index
    %0 = vector.load %arg3[%c0, %c0_0] : memref<64x128xf32, #tpu.memory_space<vmem>>, vector<64x128xf32>
    %c0_1 = arith.constant 0 : index
    %c0_2 = arith.constant 0 : index
    %1 = vector.load %arg4[%c0_1, %c0_2] : memref<1x128xf32, #tpu.memory_space<vmem>>, vector<1x128xf32>
    %c0_3 = arith.constant 0 : index
    %c0_4 = arith.constant 0 : index
    %c0_5 = arith.constant 0 : index
    %2 = vector.load %arg1[%c0_3, %c0_4, %c0_5] : memref<2x8x64xf32, #tpu.memory_space<vmem>>, vector<1x8x64xf32>
    %3 = vector.shape_cast %2 : vector<1x8x64xf32> to vector<8x64xf32>
    %cst = arith.constant dense<0.000000e+00> : vector<8x128xf32>
    %4 = tpu.matmul %3, %0, %cst {dimension_numbers = #tpu.dot_dimension_numbers<[1], [0], [0], [1], [0, 0, 1, 1], [], []>} : vector<8x64xf32>, vector<64x128xf32>, vector<8x128xf32> -> vector<8x128xf32>
    %5 = vector.broadcast %1 : vector<1x128xf32> to vector<8x128xf32>
    %6 = arith.addf %4, %5 : vector<8x128xf32>
    %c1 = arith.constant 1 : index
    %c0_6 = arith.constant 0 : index
    %c0_7 = arith.constant 0 : index
    %7 = vector.load %arg1[%c1, %c0_6, %c0_7] : memref<2x8x64xf32, #tpu.memory_space<vmem>>, vector<1x8x64xf32>
    %8 = vector.shape_cast %7 : vector<1x8x64xf32> to vector<8x64xf32>
    %cst_8 = arith.constant dense<0.000000e+00> : vector<8x128xf32>
    %9 = tpu.matmul %8, %0, %cst_8 {dimension_numbers = #tpu.dot_dimension_numbers<[1], [0], [0], [1], [0, 0, 1, 1], [], []>} : vector<8x64xf32>, vector<64x128xf32>, vector<8x128xf32> -> vector<8x128xf32>
    %10 = vector.broadcast %1 : vector<1x128xf32> to vector<8x128xf32>
    %11 = arith.addf %9, %10 : vector<8x128xf32>
    %c0_9 = arith.constant 0 : index
    %c0_10 = arith.constant 0 : index
    %c0_11 = arith.constant 0 : index
    %12 = vector.load %arg2[%c0_9, %c0_10, %c0_11] : memref<2x8x64xf32, #tpu.memory_space<vmem>>, vector<1x8x64xf32>
    %13 = vector.shape_cast %12 : vector<1x8x64xf32> to vector<8x64xf32>
    %14 = vector.extract_strided_slice %13 {offsets = [0, 0], sizes = [1, 64], strides = [1, 1]} : vector<8x64xf32> to vector<1x64xf32>
    %c1_12 = arith.constant 1 : index
    %c0_13 = arith.constant 0 : index
    %c0_14 = arith.constant 0 : index
    %15 = vector.load %arg2[%c1_12, %c0_13, %c0_14] : memref<2x8x64xf32, #tpu.memory_space<vmem>>, vector<1x8x64xf32>
    %16 = vector.shape_cast %15 : vector<1x8x64xf32> to vector<8x64xf32>
    %17 = vector.extract_strided_slice %16 {offsets = [0, 0], sizes = [1, 64], strides = [1, 1]} : vector<8x64xf32> to vector<1x64xf32>
    %18 = tpu.concatenate %14, %17 in 0 : vector<1x64xf32>, vector<1x64xf32> -> vector<2x64xf32>
    %cst_15 = arith.constant dense<0.000000e+00> : vector<2x128xf32>
    %19 = tpu.matmul %18, %0, %cst_15 {dimension_numbers = #tpu.dot_dimension_numbers<[1], [0], [0], [1], [0, 0, 1, 1], [], []>} : vector<2x64xf32>, vector<64x128xf32>, vector<2x128xf32> -> vector<2x128xf32>
    %20 = vector.broadcast %1 : vector<1x128xf32> to vector<2x128xf32>
    %21 = arith.addf %19, %20 : vector<2x128xf32>
    %c0_16 = arith.constant 0 : index
    %c0_17 = arith.constant 0 : index
    %22 = vector.load %arg5[%c0_16, %c0_17] : memref<32x128xf32, #tpu.memory_space<vmem>>, vector<32x128xf32>
    %cst_18 = arith.constant 0.000000e+00 : f32
    %23 = vector.broadcast %cst_18 : f32 to vector<2x32xf32>
    %24 = vector.extract_strided_slice %6 {offsets = [0, 0], sizes = [1, 128], strides = [1, 1]} : vector<8x128xf32> to vector<1x128xf32>
    %25 = vector.extract_strided_slice %11 {offsets = [0, 0], sizes = [1, 128], strides = [1, 1]} : vector<8x128xf32> to vector<1x128xf32>
    %26 = tpu.concatenate %24, %25 in 0 : vector<1x128xf32>, vector<1x128xf32> -> vector<2x128xf32>
    %27 = vector.extract_strided_slice %26 {offsets = [0, 0], sizes = [2, 64], strides = [1, 1]} : vector<2x128xf32> to vector<2x64xf32>
    %28 = arith.negf %27 : vector<2x64xf32>
    %29 = math.exp %28 : vector<2x64xf32>
    %cst_19 = arith.constant 1.000000e+00 : f32
    %30 = vector.broadcast %cst_19 : f32 to vector<2x64xf32>
    %31 = arith.addf %30, %29 : vector<2x64xf32>
    %32 = arith.divf %30, %31 : vector<2x64xf32>
    %33 = vector.extract_strided_slice %32 {offsets = [0, 0], sizes = [2, 32], strides = [1, 1]} : vector<2x64xf32> to vector<2x32xf32>
    %34 = vector.extract_strided_slice %32 {offsets = [0, 32], sizes = [2, 32], strides = [1, 1]} : vector<2x64xf32> to vector<2x32xf32>
    %35 = vector.extract_strided_slice %26 {offsets = [0, 64], sizes = [2, 32], strides = [1, 1]} : vector<2x128xf32> to vector<2x32xf32>
    %36 = vector.extract_strided_slice %26 {offsets = [0, 96], sizes = [2, 32], strides = [1, 1]} : vector<2x128xf32> to vector<2x32xf32>
    %37 = arith.mulf %33, %36 : vector<2x32xf32>
    %38 = arith.addf %35, %37 : vector<2x32xf32>
    %39 = math.tanh %38 : vector<2x32xf32>
    %cst_20 = arith.constant 1.000000e+00 : f32
    %40 = vector.broadcast %cst_20 : f32 to vector<2x32xf32>
    %41 = arith.subf %40, %34 : vector<2x32xf32>
    %42 = arith.mulf %41, %39 : vector<2x32xf32>
    %43 = arith.mulf %34, %23 : vector<2x32xf32>
    %44 = arith.addf %42, %43 : vector<2x32xf32>
    %45 = vector.extract_strided_slice %6 {offsets = [1, 0], sizes = [1, 128], strides = [1, 1]} : vector<8x128xf32> to vector<1x128xf32>
    %46 = vector.extract_strided_slice %11 {offsets = [1, 0], sizes = [1, 128], strides = [1, 1]} : vector<8x128xf32> to vector<1x128xf32>
    %47 = tpu.concatenate %45, %46 in 0 : vector<1x128xf32>, vector<1x128xf32> -> vector<2x128xf32>
    %cst_21 = arith.constant dense<0.000000e+00> : vector<2x128xf32>
    %48 = tpu.matmul %44, %22, %cst_21 {dimension_numbers = #tpu.dot_dimension_numbers<[1], [0], [0], [1], [0, 0, 1, 1], [], []>} : vector<2x32xf32>, vector<32x128xf32>, vector<2x128xf32> -> vector<2x128xf32>
    %49 = arith.addf %47, %48 : vector<2x128xf32>
    %50 = vector.extract_strided_slice %49 {offsets = [0, 0], sizes = [2, 64], strides = [1, 1]} : vector<2x128xf32> to vector<2x64xf32>
    %51 = arith.negf %50 : vector<2x64xf32>
    %52 = math.exp %51 : vector<2x64xf32>
    %cst_22 = arith.constant 1.000000e+00 : f32
    %53 = vector.broadcast %cst_22 : f32 to vector<2x64xf32>
    %54 = arith.addf %53, %52 : vector<2x64xf32>
    %55 = arith.divf %53, %54 : vector<2x64xf32>
    %56 = vector.extract_strided_slice %55 {offsets = [0, 0], sizes = [2, 32], strides = [1, 1]} : vector<2x64xf32> to vector<2x32xf32>
    %57 = vector.extract_strided_slice %55 {offsets = [0, 32], sizes = [2, 32], strides = [1, 1]} : vector<2x64xf32> to vector<2x32xf32>
    %58 = vector.extract_strided_slice %49 {offsets = [0, 64], sizes = [2, 32], strides = [1, 1]} : vector<2x128xf32> to vector<2x32xf32>
    %59 = vector.extract_strided_slice %49 {offsets = [0, 96], sizes = [2, 32], strides = [1, 1]} : vector<2x128xf32> to vector<2x32xf32>
    %60 = arith.mulf %56, %59 : vector<2x32xf32>
    %61 = arith.addf %58, %60 : vector<2x32xf32>
    %62 = math.tanh %61 : vector<2x32xf32>
    %cst_23 = arith.constant 1.000000e+00 : f32
    %63 = vector.broadcast %cst_23 : f32 to vector<2x32xf32>
    %64 = arith.subf %63, %57 : vector<2x32xf32>
    %65 = arith.mulf %64, %62 : vector<2x32xf32>
    %66 = arith.mulf %57, %44 : vector<2x32xf32>
    %67 = arith.addf %65, %66 : vector<2x32xf32>
    %68 = vector.extract_strided_slice %6 {offsets = [2, 0], sizes = [1, 128], strides = [1, 1]} : vector<8x128xf32> to vector<1x128xf32>
    %69 = vector.extract_strided_slice %11 {offsets = [2, 0], sizes = [1, 128], strides = [1, 1]} : vector<8x128xf32> to vector<1x128xf32>
    %70 = tpu.concatenate %68, %69 in 0 : vector<1x128xf32>, vector<1x128xf32> -> vector<2x128xf32>
    %cst_24 = arith.constant dense<0.000000e+00> : vector<2x128xf32>
    %71 = tpu.matmul %67, %22, %cst_24 {dimension_numbers = #tpu.dot_dimension_numbers<[1], [0], [0], [1], [0, 0, 1, 1], [], []>} : vector<2x32xf32>, vector<32x128xf32>, vector<2x128xf32> -> vector<2x128xf32>
    %72 = arith.addf %70, %71 : vector<2x128xf32>
    %73 = vector.extract_strided_slice %72 {offsets = [0, 0], sizes = [2, 64], strides = [1, 1]} : vector<2x128xf32> to vector<2x64xf32>
    %74 = arith.negf %73 : vector<2x64xf32>
    %75 = math.exp %74 : vector<2x64xf32>
    %cst_25 = arith.constant 1.000000e+00 : f32
    %76 = vector.broadcast %cst_25 : f32 to vector<2x64xf32>
    %77 = arith.addf %76, %75 : vector<2x64xf32>
    %78 = arith.divf %76, %77 : vector<2x64xf32>
    %79 = vector.extract_strided_slice %78 {offsets = [0, 0], sizes = [2, 32], strides = [1, 1]} : vector<2x64xf32> to vector<2x32xf32>
    %80 = vector.extract_strided_slice %78 {offsets = [0, 32], sizes = [2, 32], strides = [1, 1]} : vector<2x64xf32> to vector<2x32xf32>
    %81 = vector.extract_strided_slice %72 {offsets = [0, 64], sizes = [2, 32], strides = [1, 1]} : vector<2x128xf32> to vector<2x32xf32>
    %82 = vector.extract_strided_slice %72 {offsets = [0, 96], sizes = [2, 32], strides = [1, 1]} : vector<2x128xf32> to vector<2x32xf32>
    %83 = arith.mulf %79, %82 : vector<2x32xf32>
    %84 = arith.addf %81, %83 : vector<2x32xf32>
    %85 = math.tanh %84 : vector<2x32xf32>
    %cst_26 = arith.constant 1.000000e+00 : f32
    %86 = vector.broadcast %cst_26 : f32 to vector<2x32xf32>
    %87 = arith.subf %86, %80 : vector<2x32xf32>
    %88 = arith.mulf %87, %85 : vector<2x32xf32>
    %89 = arith.mulf %80, %67 : vector<2x32xf32>
    %90 = arith.addf %88, %89 : vector<2x32xf32>
    %91 = vector.extract_strided_slice %6 {offsets = [3, 0], sizes = [1, 128], strides = [1, 1]} : vector<8x128xf32> to vector<1x128xf32>
    %92 = vector.extract_strided_slice %11 {offsets = [3, 0], sizes = [1, 128], strides = [1, 1]} : vector<8x128xf32> to vector<1x128xf32>
    %93 = tpu.concatenate %91, %92 in 0 : vector<1x128xf32>, vector<1x128xf32> -> vector<2x128xf32>
    %cst_27 = arith.constant dense<0.000000e+00> : vector<2x128xf32>
    %94 = tpu.matmul %90, %22, %cst_27 {dimension_numbers = #tpu.dot_dimension_numbers<[1], [0], [0], [1], [0, 0, 1, 1], [], []>} : vector<2x32xf32>, vector<32x128xf32>, vector<2x128xf32> -> vector<2x128xf32>
    %95 = arith.addf %93, %94 : vector<2x128xf32>
    %96 = vector.extract_strided_slice %95 {offsets = [0, 0], sizes = [2, 64], strides = [1, 1]} : vector<2x128xf32> to vector<2x64xf32>
    %97 = arith.negf %96 : vector<2x64xf32>
    %98 = math.exp %97 : vector<2x64xf32>
    %cst_28 = arith.constant 1.000000e+00 : f32
    %99 = vector.broadcast %cst_28 : f32 to vector<2x64xf32>
    %100 = arith.addf %99, %98 : vector<2x64xf32>
    %101 = arith.divf %99, %100 : vector<2x64xf32>
    %102 = vector.extract_strided_slice %101 {offsets = [0, 0], sizes = [2, 32], strides = [1, 1]} : vector<2x64xf32> to vector<2x32xf32>
    %103 = vector.extract_strided_slice %101 {offsets = [0, 32], sizes = [2, 32], strides = [1, 1]} : vector<2x64xf32> to vector<2x32xf32>
    %104 = vector.extract_strided_slice %95 {offsets = [0, 64], sizes = [2, 32], strides = [1, 1]} : vector<2x128xf32> to vector<2x32xf32>
    %105 = vector.extract_strided_slice %95 {offsets = [0, 96], sizes = [2, 32], strides = [1, 1]} : vector<2x128xf32> to vector<2x32xf32>
    %106 = arith.mulf %102, %105 : vector<2x32xf32>
    %107 = arith.addf %104, %106 : vector<2x32xf32>
    %108 = math.tanh %107 : vector<2x32xf32>
    %cst_29 = arith.constant 1.000000e+00 : f32
    %109 = vector.broadcast %cst_29 : f32 to vector<2x32xf32>
    %110 = arith.subf %109, %103 : vector<2x32xf32>
    %111 = arith.mulf %110, %108 : vector<2x32xf32>
    %112 = arith.mulf %103, %90 : vector<2x32xf32>
    %113 = arith.addf %111, %112 : vector<2x32xf32>
    %114 = vector.extract_strided_slice %6 {offsets = [4, 0], sizes = [1, 128], strides = [1, 1]} : vector<8x128xf32> to vector<1x128xf32>
    %115 = vector.extract_strided_slice %11 {offsets = [4, 0], sizes = [1, 128], strides = [1, 1]} : vector<8x128xf32> to vector<1x128xf32>
    %116 = tpu.concatenate %114, %115 in 0 : vector<1x128xf32>, vector<1x128xf32> -> vector<2x128xf32>
    %cst_30 = arith.constant dense<0.000000e+00> : vector<2x128xf32>
    %117 = tpu.matmul %113, %22, %cst_30 {dimension_numbers = #tpu.dot_dimension_numbers<[1], [0], [0], [1], [0, 0, 1, 1], [], []>} : vector<2x32xf32>, vector<32x128xf32>, vector<2x128xf32> -> vector<2x128xf32>
    %118 = arith.addf %116, %117 : vector<2x128xf32>
    %119 = vector.extract_strided_slice %118 {offsets = [0, 0], sizes = [2, 64], strides = [1, 1]} : vector<2x128xf32> to vector<2x64xf32>
    %120 = arith.negf %119 : vector<2x64xf32>
    %121 = math.exp %120 : vector<2x64xf32>
    %cst_31 = arith.constant 1.000000e+00 : f32
    %122 = vector.broadcast %cst_31 : f32 to vector<2x64xf32>
    %123 = arith.addf %122, %121 : vector<2x64xf32>
    %124 = arith.divf %122, %123 : vector<2x64xf32>
    %125 = vector.extract_strided_slice %124 {offsets = [0, 0], sizes = [2, 32], strides = [1, 1]} : vector<2x64xf32> to vector<2x32xf32>
    %126 = vector.extract_strided_slice %124 {offsets = [0, 32], sizes = [2, 32], strides = [1, 1]} : vector<2x64xf32> to vector<2x32xf32>
    %127 = vector.extract_strided_slice %118 {offsets = [0, 64], sizes = [2, 32], strides = [1, 1]} : vector<2x128xf32> to vector<2x32xf32>
    %128 = vector.extract_strided_slice %118 {offsets = [0, 96], sizes = [2, 32], strides = [1, 1]} : vector<2x128xf32> to vector<2x32xf32>
    %129 = arith.mulf %125, %128 : vector<2x32xf32>
    %130 = arith.addf %127, %129 : vector<2x32xf32>
    %131 = math.tanh %130 : vector<2x32xf32>
    %cst_32 = arith.constant 1.000000e+00 : f32
    %132 = vector.broadcast %cst_32 : f32 to vector<2x32xf32>
    %133 = arith.subf %132, %126 : vector<2x32xf32>
    %134 = arith.mulf %133, %131 : vector<2x32xf32>
    %135 = arith.mulf %126, %113 : vector<2x32xf32>
    %136 = arith.addf %134, %135 : vector<2x32xf32>
    %137 = vector.extract_strided_slice %6 {offsets = [5, 0], sizes = [1, 128], strides = [1, 1]} : vector<8x128xf32> to vector<1x128xf32>
    %138 = vector.extract_strided_slice %11 {offsets = [5, 0], sizes = [1, 128], strides = [1, 1]} : vector<8x128xf32> to vector<1x128xf32>
    %139 = tpu.concatenate %137, %138 in 0 : vector<1x128xf32>, vector<1x128xf32> -> vector<2x128xf32>
    %cst_33 = arith.constant dense<0.000000e+00> : vector<2x128xf32>
    %140 = tpu.matmul %136, %22, %cst_33 {dimension_numbers = #tpu.dot_dimension_numbers<[1], [0], [0], [1], [0, 0, 1, 1], [], []>} : vector<2x32xf32>, vector<32x128xf32>, vector<2x128xf32> -> vector<2x128xf32>
    %141 = arith.addf %139, %140 : vector<2x128xf32>
    %142 = vector.extract_strided_slice %141 {offsets = [0, 0], sizes = [2, 64], strides = [1, 1]} : vector<2x128xf32> to vector<2x64xf32>
    %143 = arith.negf %142 : vector<2x64xf32>
    %144 = math.exp %143 : vector<2x64xf32>
    %cst_34 = arith.constant 1.000000e+00 : f32
    %145 = vector.broadcast %cst_34 : f32 to vector<2x64xf32>
    %146 = arith.addf %145, %144 : vector<2x64xf32>
    %147 = arith.divf %145, %146 : vector<2x64xf32>
    %148 = vector.extract_strided_slice %147 {offsets = [0, 0], sizes = [2, 32], strides = [1, 1]} : vector<2x64xf32> to vector<2x32xf32>
    %149 = vector.extract_strided_slice %147 {offsets = [0, 32], sizes = [2, 32], strides = [1, 1]} : vector<2x64xf32> to vector<2x32xf32>
    %150 = vector.extract_strided_slice %141 {offsets = [0, 64], sizes = [2, 32], strides = [1, 1]} : vector<2x128xf32> to vector<2x32xf32>
    %151 = vector.extract_strided_slice %141 {offsets = [0, 96], sizes = [2, 32], strides = [1, 1]} : vector<2x128xf32> to vector<2x32xf32>
    %152 = arith.mulf %148, %151 : vector<2x32xf32>
    %153 = arith.addf %150, %152 : vector<2x32xf32>
    %154 = math.tanh %153 : vector<2x32xf32>
    %cst_35 = arith.constant 1.000000e+00 : f32
    %155 = vector.broadcast %cst_35 : f32 to vector<2x32xf32>
    %156 = arith.subf %155, %149 : vector<2x32xf32>
    %157 = arith.mulf %156, %154 : vector<2x32xf32>
    %158 = arith.mulf %149, %136 : vector<2x32xf32>
    %159 = arith.addf %157, %158 : vector<2x32xf32>
    %160 = vector.extract_strided_slice %6 {offsets = [6, 0], sizes = [1, 128], strides = [1, 1]} : vector<8x128xf32> to vector<1x128xf32>
    %161 = vector.extract_strided_slice %11 {offsets = [6, 0], sizes = [1, 128], strides = [1, 1]} : vector<8x128xf32> to vector<1x128xf32>
    %162 = tpu.concatenate %160, %161 in 0 : vector<1x128xf32>, vector<1x128xf32> -> vector<2x128xf32>
    %cst_36 = arith.constant dense<0.000000e+00> : vector<2x128xf32>
    %163 = tpu.matmul %159, %22, %cst_36 {dimension_numbers = #tpu.dot_dimension_numbers<[1], [0], [0], [1], [0, 0, 1, 1], [], []>} : vector<2x32xf32>, vector<32x128xf32>, vector<2x128xf32> -> vector<2x128xf32>
    %164 = arith.addf %162, %163 : vector<2x128xf32>
    %165 = vector.extract_strided_slice %164 {offsets = [0, 0], sizes = [2, 64], strides = [1, 1]} : vector<2x128xf32> to vector<2x64xf32>
    %166 = arith.negf %165 : vector<2x64xf32>
    %167 = math.exp %166 : vector<2x64xf32>
    %cst_37 = arith.constant 1.000000e+00 : f32
    %168 = vector.broadcast %cst_37 : f32 to vector<2x64xf32>
    %169 = arith.addf %168, %167 : vector<2x64xf32>
    %170 = arith.divf %168, %169 : vector<2x64xf32>
    %171 = vector.extract_strided_slice %170 {offsets = [0, 0], sizes = [2, 32], strides = [1, 1]} : vector<2x64xf32> to vector<2x32xf32>
    %172 = vector.extract_strided_slice %170 {offsets = [0, 32], sizes = [2, 32], strides = [1, 1]} : vector<2x64xf32> to vector<2x32xf32>
    %173 = vector.extract_strided_slice %164 {offsets = [0, 64], sizes = [2, 32], strides = [1, 1]} : vector<2x128xf32> to vector<2x32xf32>
    %174 = vector.extract_strided_slice %164 {offsets = [0, 96], sizes = [2, 32], strides = [1, 1]} : vector<2x128xf32> to vector<2x32xf32>
    %175 = arith.mulf %171, %174 : vector<2x32xf32>
    %176 = arith.addf %173, %175 : vector<2x32xf32>
    %177 = math.tanh %176 : vector<2x32xf32>
    %cst_38 = arith.constant 1.000000e+00 : f32
    %178 = vector.broadcast %cst_38 : f32 to vector<2x32xf32>
    %179 = arith.subf %178, %172 : vector<2x32xf32>
    %180 = arith.mulf %179, %177 : vector<2x32xf32>
    %181 = arith.mulf %172, %159 : vector<2x32xf32>
    %182 = arith.addf %180, %181 : vector<2x32xf32>
    %c0_39 = arith.constant 0 : index
    %c0_40 = arith.constant 0 : index
    %183 = vector.load %arg6[%c0_39, %c0_40] : memref<32x256xf32, #tpu.memory_space<vmem>>, vector<32x256xf32>
    %c0_41 = arith.constant 0 : index
    %c0_42 = arith.constant 0 : index
    %184 = vector.load %arg7[%c0_41, %c0_42] : memref<1x128xf32, #tpu.memory_space<vmem>>, vector<1x128xf32>
    %185 = vector.shape_cast %184 : vector<1x128xf32> to vector<1x128xf32>
    %186 = vector.broadcast %185 : vector<1x128xf32> to vector<2x128xf32>
    %cst_43 = arith.constant dense<0.000000e+00> : vector<2x256xf32>
    %187 = tpu.matmul %182, %183, %cst_43 {dimension_numbers = #tpu.dot_dimension_numbers<[1], [0], [0], [1], [0, 0, 1, 1], [], []>} : vector<2x32xf32>, vector<32x256xf32>, vector<2x256xf32> -> vector<2x256xf32>
    %188 = vector.extract_strided_slice %187 {offsets = [0, 0], sizes = [2, 128], strides = [1, 1]} : vector<2x256xf32> to vector<2x128xf32>
    %189 = arith.addf %21, %188 : vector<2x128xf32>
    %190 = vector.extract_strided_slice %189 {offsets = [0, 0], sizes = [2, 64], strides = [1, 1]} : vector<2x128xf32> to vector<2x64xf32>
    %191 = arith.negf %190 : vector<2x64xf32>
    %192 = math.exp %191 : vector<2x64xf32>
    %cst_44 = arith.constant 1.000000e+00 : f32
    %193 = vector.broadcast %cst_44 : f32 to vector<2x64xf32>
    %194 = arith.addf %193, %192 : vector<2x64xf32>
    %195 = arith.divf %193, %194 : vector<2x64xf32>
    %196 = vector.extract_strided_slice %195 {offsets = [0, 0], sizes = [2, 32], strides = [1, 1]} : vector<2x64xf32> to vector<2x32xf32>
    %197 = vector.extract_strided_slice %195 {offsets = [0, 32], sizes = [2, 32], strides = [1, 1]} : vector<2x64xf32> to vector<2x32xf32>
    %198 = vector.extract_strided_slice %189 {offsets = [0, 64], sizes = [2, 32], strides = [1, 1]} : vector<2x128xf32> to vector<2x32xf32>
    %199 = vector.extract_strided_slice %189 {offsets = [0, 96], sizes = [2, 32], strides = [1, 1]} : vector<2x128xf32> to vector<2x32xf32>
    %200 = arith.mulf %196, %199 : vector<2x32xf32>
    %201 = arith.addf %198, %200 : vector<2x32xf32>
    %202 = math.tanh %201 : vector<2x32xf32>
    %cst_45 = arith.constant 1.000000e+00 : f32
    %203 = vector.broadcast %cst_45 : f32 to vector<2x32xf32>
    %204 = arith.subf %203, %197 : vector<2x32xf32>
    %205 = arith.mulf %204, %202 : vector<2x32xf32>
    %206 = arith.mulf %197, %182 : vector<2x32xf32>
    %207 = arith.addf %205, %206 : vector<2x32xf32>
    %cst_46 = arith.constant dense<0.000000e+00> : vector<2x256xf32>
    %208 = tpu.matmul %207, %183, %cst_46 {dimension_numbers = #tpu.dot_dimension_numbers<[1], [0], [0], [1], [0, 0, 1, 1], [], []>} : vector<2x32xf32>, vector<32x256xf32>, vector<2x256xf32> -> vector<2x256xf32>
    %209 = vector.extract_strided_slice %208 {offsets = [0, 128], sizes = [2, 128], strides = [1, 1]} : vector<2x256xf32> to vector<2x128xf32>
    %210 = arith.addf %21, %209 : vector<2x128xf32>
    %211 = arith.addf %210, %186 : vector<2x128xf32>
    %212 = vector.extract_strided_slice %208 {offsets = [0, 0], sizes = [2, 128], strides = [1, 1]} : vector<2x256xf32> to vector<2x128xf32>
    %213 = arith.addf %211, %212 : vector<2x128xf32>
    %214 = vector.extract_strided_slice %213 {offsets = [0, 0], sizes = [2, 64], strides = [1, 1]} : vector<2x128xf32> to vector<2x64xf32>
    %215 = arith.negf %214 : vector<2x64xf32>
    %216 = math.exp %215 : vector<2x64xf32>
    %cst_47 = arith.constant 1.000000e+00 : f32
    %217 = vector.broadcast %cst_47 : f32 to vector<2x64xf32>
    %218 = arith.addf %217, %216 : vector<2x64xf32>
    %219 = arith.divf %217, %218 : vector<2x64xf32>
    %220 = vector.extract_strided_slice %219 {offsets = [0, 0], sizes = [2, 32], strides = [1, 1]} : vector<2x64xf32> to vector<2x32xf32>
    %221 = vector.extract_strided_slice %219 {offsets = [0, 32], sizes = [2, 32], strides = [1, 1]} : vector<2x64xf32> to vector<2x32xf32>
    %222 = vector.extract_strided_slice %213 {offsets = [0, 64], sizes = [2, 32], strides = [1, 1]} : vector<2x128xf32> to vector<2x32xf32>
    %223 = vector.extract_strided_slice %213 {offsets = [0, 96], sizes = [2, 32], strides = [1, 1]} : vector<2x128xf32> to vector<2x32xf32>
    %224 = arith.mulf %220, %223 : vector<2x32xf32>
    %225 = arith.addf %222, %224 : vector<2x32xf32>
    %226 = math.tanh %225 : vector<2x32xf32>
    %cst_48 = arith.constant 1.000000e+00 : f32
    %227 = vector.broadcast %cst_48 : f32 to vector<2x32xf32>
    %228 = arith.subf %227, %221 : vector<2x32xf32>
    %229 = arith.mulf %228, %226 : vector<2x32xf32>
    %230 = arith.mulf %221, %207 : vector<2x32xf32>
    %231 = arith.addf %229, %230 : vector<2x32xf32>
    %cst_49 = arith.constant dense<0.000000e+00> : vector<2x256xf32>
    %232 = tpu.matmul %231, %183, %cst_49 {dimension_numbers = #tpu.dot_dimension_numbers<[1], [0], [0], [1], [0, 0, 1, 1], [], []>} : vector<2x32xf32>, vector<32x256xf32>, vector<2x256xf32> -> vector<2x256xf32>
    %233 = vector.extract_strided_slice %232 {offsets = [0, 128], sizes = [2, 128], strides = [1, 1]} : vector<2x256xf32> to vector<2x128xf32>
    %234 = arith.addf %211, %233 : vector<2x128xf32>
    %235 = arith.addf %234, %186 : vector<2x128xf32>
    %236 = vector.extract_strided_slice %232 {offsets = [0, 0], sizes = [2, 128], strides = [1, 1]} : vector<2x256xf32> to vector<2x128xf32>
    %237 = arith.addf %235, %236 : vector<2x128xf32>
    %238 = vector.extract_strided_slice %237 {offsets = [0, 0], sizes = [2, 64], strides = [1, 1]} : vector<2x128xf32> to vector<2x64xf32>
    %239 = arith.negf %238 : vector<2x64xf32>
    %240 = math.exp %239 : vector<2x64xf32>
    %cst_50 = arith.constant 1.000000e+00 : f32
    %241 = vector.broadcast %cst_50 : f32 to vector<2x64xf32>
    %242 = arith.addf %241, %240 : vector<2x64xf32>
    %243 = arith.divf %241, %242 : vector<2x64xf32>
    %244 = vector.extract_strided_slice %243 {offsets = [0, 0], sizes = [2, 32], strides = [1, 1]} : vector<2x64xf32> to vector<2x32xf32>
    %245 = vector.extract_strided_slice %243 {offsets = [0, 32], sizes = [2, 32], strides = [1, 1]} : vector<2x64xf32> to vector<2x32xf32>
    %246 = vector.extract_strided_slice %237 {offsets = [0, 64], sizes = [2, 32], strides = [1, 1]} : vector<2x128xf32> to vector<2x32xf32>
    %247 = vector.extract_strided_slice %237 {offsets = [0, 96], sizes = [2, 32], strides = [1, 1]} : vector<2x128xf32> to vector<2x32xf32>
    %248 = arith.mulf %244, %247 : vector<2x32xf32>
    %249 = arith.addf %246, %248 : vector<2x32xf32>
    %250 = math.tanh %249 : vector<2x32xf32>
    %cst_51 = arith.constant 1.000000e+00 : f32
    %251 = vector.broadcast %cst_51 : f32 to vector<2x32xf32>
    %252 = arith.subf %251, %245 : vector<2x32xf32>
    %253 = arith.mulf %252, %250 : vector<2x32xf32>
    %254 = arith.mulf %245, %231 : vector<2x32xf32>
    %255 = arith.addf %253, %254 : vector<2x32xf32>
    %cst_52 = arith.constant dense<0.000000e+00> : vector<2x256xf32>
    %256 = tpu.matmul %255, %183, %cst_52 {dimension_numbers = #tpu.dot_dimension_numbers<[1], [0], [0], [1], [0, 0, 1, 1], [], []>} : vector<2x32xf32>, vector<32x256xf32>, vector<2x256xf32> -> vector<2x256xf32>
    %257 = vector.extract_strided_slice %256 {offsets = [0, 128], sizes = [2, 128], strides = [1, 1]} : vector<2x256xf32> to vector<2x128xf32>
    %258 = arith.addf %235, %257 : vector<2x128xf32>
    %259 = arith.addf %258, %186 : vector<2x128xf32>
    %260 = vector.extract_strided_slice %256 {offsets = [0, 0], sizes = [2, 128], strides = [1, 1]} : vector<2x256xf32> to vector<2x128xf32>
    %261 = arith.addf %259, %260 : vector<2x128xf32>
    %262 = vector.extract_strided_slice %261 {offsets = [0, 0], sizes = [2, 64], strides = [1, 1]} : vector<2x128xf32> to vector<2x64xf32>
    %263 = arith.negf %262 : vector<2x64xf32>
    %264 = math.exp %263 : vector<2x64xf32>
    %cst_53 = arith.constant 1.000000e+00 : f32
    %265 = vector.broadcast %cst_53 : f32 to vector<2x64xf32>
    %266 = arith.addf %265, %264 : vector<2x64xf32>
    %267 = arith.divf %265, %266 : vector<2x64xf32>
    %268 = vector.extract_strided_slice %267 {offsets = [0, 0], sizes = [2, 32], strides = [1, 1]} : vector<2x64xf32> to vector<2x32xf32>
    %269 = vector.extract_strided_slice %267 {offsets = [0, 32], sizes = [2, 32], strides = [1, 1]} : vector<2x64xf32> to vector<2x32xf32>
    %270 = vector.extract_strided_slice %261 {offsets = [0, 64], sizes = [2, 32], strides = [1, 1]} : vector<2x128xf32> to vector<2x32xf32>
    %271 = vector.extract_strided_slice %261 {offsets = [0, 96], sizes = [2, 32], strides = [1, 1]} : vector<2x128xf32> to vector<2x32xf32>
    %272 = arith.mulf %268, %271 : vector<2x32xf32>
    %273 = arith.addf %270, %272 : vector<2x32xf32>
    %274 = math.tanh %273 : vector<2x32xf32>
    %cst_54 = arith.constant 1.000000e+00 : f32
    %275 = vector.broadcast %cst_54 : f32 to vector<2x32xf32>
    %276 = arith.subf %275, %269 : vector<2x32xf32>
    %277 = arith.mulf %276, %274 : vector<2x32xf32>
    %278 = arith.mulf %269, %255 : vector<2x32xf32>
    %279 = arith.addf %277, %278 : vector<2x32xf32>
    %cst_55 = arith.constant dense<0.000000e+00> : vector<2x256xf32>
    %280 = tpu.matmul %279, %183, %cst_55 {dimension_numbers = #tpu.dot_dimension_numbers<[1], [0], [0], [1], [0, 0, 1, 1], [], []>} : vector<2x32xf32>, vector<32x256xf32>, vector<2x256xf32> -> vector<2x256xf32>
    %281 = vector.extract_strided_slice %280 {offsets = [0, 128], sizes = [2, 128], strides = [1, 1]} : vector<2x256xf32> to vector<2x128xf32>
    %282 = arith.addf %259, %281 : vector<2x128xf32>
    %283 = arith.addf %282, %186 : vector<2x128xf32>
    %284 = vector.extract_strided_slice %280 {offsets = [0, 0], sizes = [2, 128], strides = [1, 1]} : vector<2x256xf32> to vector<2x128xf32>
    %285 = arith.addf %283, %284 : vector<2x128xf32>
    %286 = vector.extract_strided_slice %285 {offsets = [0, 0], sizes = [2, 64], strides = [1, 1]} : vector<2x128xf32> to vector<2x64xf32>
    %287 = arith.negf %286 : vector<2x64xf32>
    %288 = math.exp %287 : vector<2x64xf32>
    %cst_56 = arith.constant 1.000000e+00 : f32
    %289 = vector.broadcast %cst_56 : f32 to vector<2x64xf32>
    %290 = arith.addf %289, %288 : vector<2x64xf32>
    %291 = arith.divf %289, %290 : vector<2x64xf32>
    %292 = vector.extract_strided_slice %291 {offsets = [0, 0], sizes = [2, 32], strides = [1, 1]} : vector<2x64xf32> to vector<2x32xf32>
    %293 = vector.extract_strided_slice %291 {offsets = [0, 32], sizes = [2, 32], strides = [1, 1]} : vector<2x64xf32> to vector<2x32xf32>
    %294 = vector.extract_strided_slice %285 {offsets = [0, 64], sizes = [2, 32], strides = [1, 1]} : vector<2x128xf32> to vector<2x32xf32>
    %295 = vector.extract_strided_slice %285 {offsets = [0, 96], sizes = [2, 32], strides = [1, 1]} : vector<2x128xf32> to vector<2x32xf32>
    %296 = arith.mulf %292, %295 : vector<2x32xf32>
    %297 = arith.addf %294, %296 : vector<2x32xf32>
    %298 = math.tanh %297 : vector<2x32xf32>
    %cst_57 = arith.constant 1.000000e+00 : f32
    %299 = vector.broadcast %cst_57 : f32 to vector<2x32xf32>
    %300 = arith.subf %299, %293 : vector<2x32xf32>
    %301 = arith.mulf %300, %298 : vector<2x32xf32>
    %302 = arith.mulf %293, %279 : vector<2x32xf32>
    %303 = arith.addf %301, %302 : vector<2x32xf32>
    %cst_58 = arith.constant dense<0.000000e+00> : vector<2x256xf32>
    %304 = tpu.matmul %303, %183, %cst_58 {dimension_numbers = #tpu.dot_dimension_numbers<[1], [0], [0], [1], [0, 0, 1, 1], [], []>} : vector<2x32xf32>, vector<32x256xf32>, vector<2x256xf32> -> vector<2x256xf32>
    %305 = vector.extract_strided_slice %304 {offsets = [0, 128], sizes = [2, 128], strides = [1, 1]} : vector<2x256xf32> to vector<2x128xf32>
    %306 = arith.addf %283, %305 : vector<2x128xf32>
    %307 = arith.addf %306, %186 : vector<2x128xf32>
    %308 = vector.extract_strided_slice %304 {offsets = [0, 0], sizes = [2, 128], strides = [1, 1]} : vector<2x256xf32> to vector<2x128xf32>
    %309 = arith.addf %307, %308 : vector<2x128xf32>
    %310 = vector.extract_strided_slice %309 {offsets = [0, 0], sizes = [2, 64], strides = [1, 1]} : vector<2x128xf32> to vector<2x64xf32>
    %311 = arith.negf %310 : vector<2x64xf32>
    %312 = math.exp %311 : vector<2x64xf32>
    %cst_59 = arith.constant 1.000000e+00 : f32
    %313 = vector.broadcast %cst_59 : f32 to vector<2x64xf32>
    %314 = arith.addf %313, %312 : vector<2x64xf32>
    %315 = arith.divf %313, %314 : vector<2x64xf32>
    %316 = vector.extract_strided_slice %315 {offsets = [0, 0], sizes = [2, 32], strides = [1, 1]} : vector<2x64xf32> to vector<2x32xf32>
    %317 = vector.extract_strided_slice %315 {offsets = [0, 32], sizes = [2, 32], strides = [1, 1]} : vector<2x64xf32> to vector<2x32xf32>
    %318 = vector.extract_strided_slice %309 {offsets = [0, 64], sizes = [2, 32], strides = [1, 1]} : vector<2x128xf32> to vector<2x32xf32>
    %319 = vector.extract_strided_slice %309 {offsets = [0, 96], sizes = [2, 32], strides = [1, 1]} : vector<2x128xf32> to vector<2x32xf32>
    %320 = arith.mulf %316, %319 : vector<2x32xf32>
    %321 = arith.addf %318, %320 : vector<2x32xf32>
    %322 = math.tanh %321 : vector<2x32xf32>
    %cst_60 = arith.constant 1.000000e+00 : f32
    %323 = vector.broadcast %cst_60 : f32 to vector<2x32xf32>
    %324 = arith.subf %323, %317 : vector<2x32xf32>
    %325 = arith.mulf %324, %322 : vector<2x32xf32>
    %326 = arith.mulf %317, %303 : vector<2x32xf32>
    %327 = arith.addf %325, %326 : vector<2x32xf32>
    %cst_61 = arith.constant dense<0.000000e+00> : vector<2x256xf32>
    %328 = tpu.matmul %327, %183, %cst_61 {dimension_numbers = #tpu.dot_dimension_numbers<[1], [0], [0], [1], [0, 0, 1, 1], [], []>} : vector<2x32xf32>, vector<32x256xf32>, vector<2x256xf32> -> vector<2x256xf32>
    %329 = vector.extract_strided_slice %328 {offsets = [0, 128], sizes = [2, 128], strides = [1, 1]} : vector<2x256xf32> to vector<2x128xf32>
    %330 = arith.addf %307, %329 : vector<2x128xf32>
    %331 = arith.addf %330, %186 : vector<2x128xf32>
    %332 = vector.extract_strided_slice %328 {offsets = [0, 0], sizes = [2, 128], strides = [1, 1]} : vector<2x256xf32> to vector<2x128xf32>
    %333 = arith.addf %331, %332 : vector<2x128xf32>
    %334 = vector.extract_strided_slice %333 {offsets = [0, 0], sizes = [2, 64], strides = [1, 1]} : vector<2x128xf32> to vector<2x64xf32>
    %335 = arith.negf %334 : vector<2x64xf32>
    %336 = math.exp %335 : vector<2x64xf32>
    %cst_62 = arith.constant 1.000000e+00 : f32
    %337 = vector.broadcast %cst_62 : f32 to vector<2x64xf32>
    %338 = arith.addf %337, %336 : vector<2x64xf32>
    %339 = arith.divf %337, %338 : vector<2x64xf32>
    %340 = vector.extract_strided_slice %339 {offsets = [0, 0], sizes = [2, 32], strides = [1, 1]} : vector<2x64xf32> to vector<2x32xf32>
    %341 = vector.extract_strided_slice %339 {offsets = [0, 32], sizes = [2, 32], strides = [1, 1]} : vector<2x64xf32> to vector<2x32xf32>
    %342 = vector.extract_strided_slice %333 {offsets = [0, 64], sizes = [2, 32], strides = [1, 1]} : vector<2x128xf32> to vector<2x32xf32>
    %343 = vector.extract_strided_slice %333 {offsets = [0, 96], sizes = [2, 32], strides = [1, 1]} : vector<2x128xf32> to vector<2x32xf32>
    %344 = arith.mulf %340, %343 : vector<2x32xf32>
    %345 = arith.addf %342, %344 : vector<2x32xf32>
    %346 = math.tanh %345 : vector<2x32xf32>
    %cst_63 = arith.constant 1.000000e+00 : f32
    %347 = vector.broadcast %cst_63 : f32 to vector<2x32xf32>
    %348 = arith.subf %347, %341 : vector<2x32xf32>
    %349 = arith.mulf %348, %346 : vector<2x32xf32>
    %350 = arith.mulf %341, %327 : vector<2x32xf32>
    %351 = arith.addf %349, %350 : vector<2x32xf32>
    %cst_64 = arith.constant dense<0.000000e+00> : vector<2x256xf32>
    %352 = tpu.matmul %351, %183, %cst_64 {dimension_numbers = #tpu.dot_dimension_numbers<[1], [0], [0], [1], [0, 0, 1, 1], [], []>} : vector<2x32xf32>, vector<32x256xf32>, vector<2x256xf32> -> vector<2x256xf32>
    %353 = vector.extract_strided_slice %352 {offsets = [0, 128], sizes = [2, 128], strides = [1, 1]} : vector<2x256xf32> to vector<2x128xf32>
    %354 = arith.addf %331, %353 : vector<2x128xf32>
    %355 = arith.addf %354, %186 : vector<2x128xf32>
    %356 = vector.extract_strided_slice %352 {offsets = [0, 0], sizes = [2, 128], strides = [1, 1]} : vector<2x256xf32> to vector<2x128xf32>
    %357 = arith.addf %355, %356 : vector<2x128xf32>
    %358 = vector.extract_strided_slice %357 {offsets = [0, 0], sizes = [2, 64], strides = [1, 1]} : vector<2x128xf32> to vector<2x64xf32>
    %359 = arith.negf %358 : vector<2x64xf32>
    %360 = math.exp %359 : vector<2x64xf32>
    %cst_65 = arith.constant 1.000000e+00 : f32
    %361 = vector.broadcast %cst_65 : f32 to vector<2x64xf32>
    %362 = arith.addf %361, %360 : vector<2x64xf32>
    %363 = arith.divf %361, %362 : vector<2x64xf32>
    %364 = vector.extract_strided_slice %363 {offsets = [0, 0], sizes = [2, 32], strides = [1, 1]} : vector<2x64xf32> to vector<2x32xf32>
    %365 = vector.extract_strided_slice %363 {offsets = [0, 32], sizes = [2, 32], strides = [1, 1]} : vector<2x64xf32> to vector<2x32xf32>
    %366 = vector.extract_strided_slice %357 {offsets = [0, 64], sizes = [2, 32], strides = [1, 1]} : vector<2x128xf32> to vector<2x32xf32>
    %367 = vector.extract_strided_slice %357 {offsets = [0, 96], sizes = [2, 32], strides = [1, 1]} : vector<2x128xf32> to vector<2x32xf32>
    %368 = arith.mulf %364, %367 : vector<2x32xf32>
    %369 = arith.addf %366, %368 : vector<2x32xf32>
    %370 = math.tanh %369 : vector<2x32xf32>
    %cst_66 = arith.constant 1.000000e+00 : f32
    %371 = vector.broadcast %cst_66 : f32 to vector<2x32xf32>
    %372 = arith.subf %371, %365 : vector<2x32xf32>
    %373 = arith.mulf %372, %370 : vector<2x32xf32>
    %374 = arith.mulf %365, %351 : vector<2x32xf32>
    %375 = arith.addf %373, %374 : vector<2x32xf32>
    %c0_67 = arith.constant 0 : index
    %c0_68 = arith.constant 0 : index
    %376 = vector.load %arg8[%c0_67, %c0_68] : memref<32x64xf32, #tpu.memory_space<vmem>>, vector<32x64xf32>
    %c0_69 = arith.constant 0 : index
    %c0_70 = arith.constant 0 : index
    %377 = vector.load %arg9[%c0_69, %c0_70] : memref<1x64xf32, #tpu.memory_space<vmem>>, vector<1x64xf32>
    %378 = tpu.concatenate %207, %231, %255, %279, %303, %327, %351, %375 in 0 : vector<2x32xf32>, vector<2x32xf32>, vector<2x32xf32>, vector<2x32xf32>, vector<2x32xf32>, vector<2x32xf32>, vector<2x32xf32>, vector<2x32xf32> -> vector<16x32xf32>
    %cst_71 = arith.constant dense<0.000000e+00> : vector<16x64xf32>
    %379 = tpu.matmul %378, %376, %cst_71 {dimension_numbers = #tpu.dot_dimension_numbers<[1], [0], [0], [1], [0, 0, 1, 1], [], []>} : vector<16x32xf32>, vector<32x64xf32>, vector<16x64xf32> -> vector<16x64xf32>
    %380 = vector.broadcast %377 : vector<1x64xf32> to vector<16x64xf32>
    %381 = arith.addf %379, %380 : vector<16x64xf32>
    %382 = vector.extract_strided_slice %381 {offsets = [0, 0], sizes = [2, 64], strides = [1, 1]} : vector<16x64xf32> to vector<2x64xf32>
    %383 = arith.addf %18, %382 : vector<2x64xf32>
    %384 = vector.extract_strided_slice %381 {offsets = [2, 0], sizes = [2, 64], strides = [1, 1]} : vector<16x64xf32> to vector<2x64xf32>
    %385 = arith.addf %383, %384 : vector<2x64xf32>
    %386 = vector.extract_strided_slice %381 {offsets = [4, 0], sizes = [2, 64], strides = [1, 1]} : vector<16x64xf32> to vector<2x64xf32>
    %387 = arith.addf %385, %386 : vector<2x64xf32>
    %388 = vector.extract_strided_slice %381 {offsets = [6, 0], sizes = [2, 64], strides = [1, 1]} : vector<16x64xf32> to vector<2x64xf32>
    %389 = arith.addf %387, %388 : vector<2x64xf32>
    %390 = vector.extract_strided_slice %381 {offsets = [8, 0], sizes = [2, 64], strides = [1, 1]} : vector<16x64xf32> to vector<2x64xf32>
    %391 = arith.addf %389, %390 : vector<2x64xf32>
    %392 = vector.extract_strided_slice %381 {offsets = [10, 0], sizes = [2, 64], strides = [1, 1]} : vector<16x64xf32> to vector<2x64xf32>
    %393 = arith.addf %391, %392 : vector<2x64xf32>
    %394 = vector.extract_strided_slice %381 {offsets = [12, 0], sizes = [2, 64], strides = [1, 1]} : vector<16x64xf32> to vector<2x64xf32>
    %395 = arith.addf %393, %394 : vector<2x64xf32>
    %396 = vector.extract_strided_slice %381 {offsets = [14, 0], sizes = [2, 64], strides = [1, 1]} : vector<16x64xf32> to vector<2x64xf32>
    %397 = arith.addf %395, %396 : vector<2x64xf32>
    %398 = tpu.concatenate %383, %385, %387, %389, %391, %393, %395, %397 in 1 : vector<2x64xf32>, vector<2x64xf32>, vector<2x64xf32>, vector<2x64xf32>, vector<2x64xf32>, vector<2x64xf32>, vector<2x64xf32>, vector<2x64xf32> -> vector<2x512xf32>
    %c0_72 = arith.constant 0 : index
    %c0_73 = arith.constant 0 : index
    %399 = vector.load %arg10[%c0_72, %c0_73] : memref<2x512xf32, #tpu.memory_space<vmem>>, vector<2x512xf32>
    tpu.vector_store %arg10[%c0_72, %c0_73], %398 {strides = array<i32>} : memref<2x512xf32, #tpu.memory_space<vmem>>, vector<2x512xf32>,
    return
  }
  func.func @transform_0(%arg0: i32) -> (i32, i32, i32) {
    %c0_i32 = arith.constant 0 : i32
    %c0_i32_0 = arith.constant 0 : i32
    %c0_i32_1 = arith.constant 0 : i32
    %c0_i32_2 = arith.constant 0 : i32
    return %c0_i32, %c0_i32_0, %c0_i32_1 : i32, i32, i32
  }
  func.func @transform_1(%arg0: i32) -> (i32, i32, i32) {
    %c0_i32 = arith.constant 0 : i32
    %c0_i32_0 = arith.constant 0 : i32
    %c0_i32_1 = arith.constant 0 : i32
    %c0_i32_2 = arith.constant 0 : i32
    return %c0_i32, %c0_i32_0, %c0_i32_1 : i32, i32, i32
  }
  func.func @transform_2(%arg0: i32) -> (i32, i32) {
    %c0_i32 = arith.constant 0 : i32
    %c0_i32_0 = arith.constant 0 : i32
    %c0_i32_1 = arith.constant 0 : i32
    return %c0_i32, %c0_i32_0 : i32, i32
  }
  func.func @transform_3(%arg0: i32) -> (i32, i32) {
    %c0_i32 = arith.constant 0 : i32
    %c0_i32_0 = arith.constant 0 : i32
    %c0_i32_1 = arith.constant 0 : i32
    return %c0_i32, %c0_i32_0 : i32, i32
  }
  func.func @transform_4(%arg0: i32) -> (i32, i32) {
    %c0_i32 = arith.constant 0 : i32
    %c0_i32_0 = arith.constant 0 : i32
    %c0_i32_1 = arith.constant 0 : i32
    return %c0_i32, %c0_i32_0 : i32, i32
  }
  func.func @transform_5(%arg0: i32) -> (i32, i32) {
    %c0_i32 = arith.constant 0 : i32
    %c0_i32_0 = arith.constant 0 : i32
    %c0_i32_1 = arith.constant 0 : i32
    return %c0_i32, %c0_i32_0 : i32, i32
  }
  func.func @transform_6(%arg0: i32) -> (i32, i32) {
    %c0_i32 = arith.constant 0 : i32
    %c0_i32_0 = arith.constant 0 : i32
    %c0_i32_1 = arith.constant 0 : i32
    return %c0_i32, %c0_i32_0 : i32, i32
  }
  func.func @transform_7(%arg0: i32) -> (i32, i32) {
    %c0_i32 = arith.constant 0 : i32
    %c0_i32_0 = arith.constant 0 : i32
    %c0_i32_1 = arith.constant 0 : i32
    return %c0_i32, %c0_i32_0 : i32, i32
  }
  func.func @transform_8(%arg0: i32) -> (i32, i32) {
    %c0_i32 = arith.constant 0 : i32
    %c0_i32_0 = arith.constant 0 : i32
    %c0_i32_1 = arith.constant 0 : i32
    return %c0_i32, %c0_i32_0 : i32, i32
  }
  func.func @transform_9(%arg0: i32) -> (i32, i32) {
    %c0_i32 = arith.constant 0 : i32
    %c0_i32_0 = arith.constant 0 : i32
    %c0_i32_1 = arith.constant 0 : i32
    return %c0_i32, %c0_i32_0 : i32, i32
  }
}

</mosaic_0001>

<llo_original>
// kernel: tpu_custom_call.1
$region0: #{tpu_custom_call.1}
  #allocation0 [shape = 'u32[]', space=smem, size = 0x4, offset = 0x4, fixed_abs, tag = 'smem constant byte address 0x4 - core index']
  #allocation1 [shape = 'u32[144,128]{1,0:T(1,128)}', space=vmem, size = 0x12000, scoped, tag = 'internal scratch']
  %s0 = inlined_call_operand.hbm [shape: f32[2,8,64], index: 0, kind: input, shape index: {}]
  %s1 = inlined_call_operand.hbm [shape: f32[2,8,64], index: 1, kind: input, shape index: {}]
  %s2 = inlined_call_operand.hbm [shape: f32[64,128], index: 2, kind: input, shape index: {}]
  %s3 = inlined_call_operand.vmem [shape: f32[1,128], index: 3, kind: input, shape index: {}]
  %s4 = inlined_call_operand.hbm [shape: f32[32,128], index: 4, kind: input, shape index: {}]
  %s5 = inlined_call_operand.hbm [shape: f32[32,256], index: 5, kind: input, shape index: {}]
  %s6 = inlined_call_operand.vmem [shape: f32[1,128], index: 6, kind: input, shape index: {}]
  %s7 = inlined_call_operand.hbm [shape: f32[32,64], index: 7, kind: input, shape index: {}]
  %s8 = inlined_call_operand.vmem [shape: f32[1,64], index: 8, kind: input, shape index: {}]
  %s9 = inlined_call_operand.hbm [shape: f32[2,512], index: 9, kind: output, shape index: {}]
  %s10 = sld [smem:[#allocation0]]
  $region70: #{tpu_custom_call.1} parent=0
    _
  %s12 = ssub.s32 1, %s10
  %s13 = scalar_select 0, %s12, %s10
  $region1: #{tpu_custom_call.1} parent=0
    #allocation2 [shape = 'u8[8192]{0}', space=vmem, size = 0x2000, scoped, tag = 'input window, operand 0, single buffered']
    #allocation3 [shape = 's32[1]{0}', space=sflag, size = 0x4, scoped, tag = 'scoped memory for tpu_custom_call.1']
    #allocation4 [shape = 's32[1]{0}', space=sflag, size = 0x4, scoped, tag = 'scoped memory for tpu_custom_call.1']
    #allocation5 [shape = 'u8[8192]{0}', space=vmem, size = 0x2000, scoped, tag = 'input window, operand 1, single buffered']
    #allocation6 [shape = 's32[1]{0}', space=sflag, size = 0x4, scoped, tag = 'scoped memory for tpu_custom_call.1']
    #allocation7 [shape = 'u8[32768]{0}', space=vmem, size = 0x8000, scoped, tag = 'input window, operand 2, single buffered']
    #allocation8 [shape = 'u8[16384]{0}', space=vmem, size = 0x4000, scoped, tag = 'input window, operand 4, single buffered']
    #allocation9 [shape = 's32[1]{0}', space=sflag, size = 0x4, scoped, tag = 'scoped memory for tpu_custom_call.1']
    #allocation10 [shape = 'u8[32768]{0}', space=vmem, size = 0x8000, scoped, tag = 'input window, operand 5, single buffered']
    #allocation11 [shape = 'u8[16384]{0}', space=vmem, size = 0x4000, scoped, tag = 'input window, operand 7, single buffered']
    #allocation12 [shape = 's32[1]{0}', space=sflag, size = 0x4, scoped, tag = 'scoped memory for tpu_custom_call.1']
    #allocation13 [shape = 'u8[4096]{0}', space=vmem, size = 0x1000, scoped, tag = 'output window, operand 0, single buffered']
    %14 = vsyncpa [#allocation3], 0
    %15 = vsyncpa [#allocation6], 0
    %16 = vsyncpa [#allocation9], 0
    %17 = vsyncpa [#allocation12], 0
    %18 = vsyncpa [#allocation4], 0
    // Predicated region
    $region2: #{tpu_custom_call.1} parent=1 // pred_check
      _
    $region3: #{tpu_custom_call.1} parent=1 // pred_check_branch
      %20 = sbr.rel (0) target = $region5
    $region4: #{tpu_custom_call.1} parent=1 // pred_region
      %s22 = ssub.s32 256, 256
      %23 = vsyncadd [#allocation3], %s22
      %s24 = sshll.u32 [#allocation2], 4
      %s25 = int_to_ptr.vmem [resolvable:$true] %s24
      %30 = dma.hbm_to_vmem [thread:$0]  %s0, 256, %s25, [#allocation3], 128, 128, 8
    $region5: #{tpu_custom_call.1} parent=1 // pred_fallthru
      _
    // Predicated region
    $region6: #{tpu_custom_call.1} parent=1 // pred_check
      _
    $region7: #{tpu_custom_call.1} parent=1 // pred_check_branch
      %32 = sbr.rel (0) target = $region9
    $region8: #{tpu_custom_call.1} parent=1 // pred_region
      %s34 = ssub.s32 256, 256
      %35 = vsyncadd [#allocation6], %s34
      %s36 = sshll.u32 [#allocation5], 4
      %s37 = int_to_ptr.vmem [resolvable:$true] %s36
      %42 = dma.hbm_to_vmem [thread:$0]  %s1, 256, %s37, [#allocation6], 128, 128, 8
    $region9: #{tpu_custom_call.1} parent=1 // pred_fallthru
      _
    // Predicated region
    $region10: #{tpu_custom_call.1} parent=1 // pred_check
      _
    $region11: #{tpu_custom_call.1} parent=1 // pred_check_branch
      %44 = sbr.rel (0) target = $region13
    $region12: #{tpu_custom_call.1} parent=1 // pred_region
      %s46 = ssub.s32 1024, 1024
      %47 = vsyncadd [#allocation6], %s46
      %s48 = sshll.u32 [#allocation7], 4
      %s49 = int_to_ptr.vmem [resolvable:$true] %s48
      %54 = dma.hbm_to_vmem [thread:$0]  %s2, 1024, %s49, [#allocation6], 128, 128, 8
    $region13: #{tpu_custom_call.1} parent=1 // pred_fallthru
      _
    // Predicated region
    $region14: #{tpu_custom_call.1} parent=1 // pred_check
      _
    $region15: #{tpu_custom_call.1} parent=1 // pred_check_branch
      %56 = sbr.rel (0) target = $region17
    $region16: #{tpu_custom_call.1} parent=1 // pred_region
      _
    $region17: #{tpu_custom_call.1} parent=1 // pred_fallthru
      _
    // Predicated region
    $region18: #{tpu_custom_call.1} parent=1 // pred_check
      _
    $region19: #{tpu_custom_call.1} parent=1 // pred_check_branch
      %58 = sbr.rel (0) target = $region21
    $region20: #{tpu_custom_call.1} parent=1 // pred_region
      %s60 = ssub.s32 512, 512
      %61 = vsyncadd [#allocation9], %s60
      %s62 = sshll.u32 [#allocation8], 4
      %s63 = int_to_ptr.vmem [resolvable:$true] %s62
      %68 = dma.hbm_to_vmem [thread:$0]  %s4, 512, %s63, [#allocation9], 128, 128, 8
    $region21: #{tpu_custom_call.1} parent=1 // pred_fallthru
      _
    // Predicated region
    $region22: #{tpu_custom_call.1} parent=1 // pred_check
      _
    $region23: #{tpu_custom_call.1} parent=1 // pred_check_branch
      %70 = sbr.rel (0) target = $region25
    $region24: #{tpu_custom_call.1} parent=1 // pred_region
      %s72 = ssub.s32 1024, 1024
      %73 = vsyncadd [#allocation9], %s72
      %s74 = sshll.u32 [#allocation10], 4
      %s75 = int_to_ptr.vmem [resolvable:$true] %s74
      %80 = dma.hbm_to_vmem [thread:$0]  %s5, 1024, %s75, [#allocation9], 256, 256, 16
    $region25: #{tpu_custom_call.1} parent=1 // pred_fallthru
      _
    // Predicated region
    $region26: #{tpu_custom_call.1} parent=1 // pred_check
      _
    $region27: #{tpu_custom_call.1} parent=1 // pred_check_branch
      %82 = sbr.rel (0) target = $region29
    $region28: #{tpu_custom_call.1} parent=1 // pred_region
      _
    $region29: #{tpu_custom_call.1} parent=1 // pred_fallthru
      _
    // Predicated region
    $region30: #{tpu_custom_call.1} parent=1 // pred_check
      _
    $region31: #{tpu_custom_call.1} parent=1 // pred_check_branch
      %84 = sbr.rel (0) target = $region33
    $region32: #{tpu_custom_call.1} parent=1 // pred_region
      %s86 = ssub.s32 512, 512
      %87 = vsyncadd [#allocation12], %s86
      %s88 = sshll.u32 [#allocation11], 4
      %s89 = int_to_ptr.vmem [resolvable:$true] %s88
      %94 = dma.hbm_to_vmem [thread:$0]  %s7, 512, %s89, [#allocation12], 128, 128, 8
    $region33: #{tpu_custom_call.1} parent=1 // pred_fallthru
      _
    // Predicated region
    $region34: #{tpu_custom_call.1} parent=1 // pred_check
      _
    $region35: #{tpu_custom_call.1} parent=1 // pred_check_branch
      %96 = sbr.rel (0) target = $region37
    $region36: #{tpu_custom_call.1} parent=1 // pred_region
      _
    $region37: #{tpu_custom_call.1} parent=1 // pred_fallthru
      _
    // Predicated region
    $region38: #{tpu_custom_call.1} parent=1 // pred_check
      _
    $region39: #{tpu_custom_call.1} parent=1 // pred_check_branch
      %98 = sbr.rel (0) target = $region41
    $region40: #{tpu_custom_call.1} parent=1 // pred_region
      %99 = dma.done [#allocation3], 256
    $region41: #{tpu_custom_call.1} parent=1 // pred_fallthru
      _
    // Predicated region
    $region42: #{tpu_custom_call.1} parent=1 // pred_check
      _
    $region43: #{tpu_custom_call.1} parent=1 // pred_check_branch
      %101 = sbr.rel (0) target = $region45
    $region44: #{tpu_custom_call.1} parent=1 // pred_region
      %102 = dma.done [#allocation6], 256
    $region45: #{tpu_custom_call.1} parent=1 // pred_fallthru
      _
    // Predicated region
    $region46: #{tpu_custom_call.1} parent=1 // pred_check
      _
    $region47: #{tpu_custom_call.1} parent=1 // pred_check_branch
      %104 = sbr.rel (0) target = $region49
    $region48: #{tpu_custom_call.1} parent=1 // pred_region
      %105 = dma.done [#allocation6], 1024
    $region49: #{tpu_custom_call.1} parent=1 // pred_fallthru
      _
    // Predicated region
    $region50: #{tpu_custom_call.1} parent=1 // pred_check
      _
    $region51: #{tpu_custom_call.1} parent=1 // pred_check_branch
      %107 = sbr.rel (0) target = $region53
    $region52: #{tpu_custom_call.1} parent=1 // pred_region
      %108 = dma.done [#allocation9], 512
    $region53: #{tpu_custom_call.1} parent=1 // pred_fallthru
      _
    // Predicated region
    $region54: #{tpu_custom_call.1} parent=1 // pred_check
      _
    $region55: #{tpu_custom_call.1} parent=1 // pred_check_branch
      %110 = sbr.rel (0) target = $region57
    $region56: #{tpu_custom_call.1} parent=1 // pred_region
      %111 = dma.done [#allocation9], 1024
    $region57: #{tpu_custom_call.1} parent=1 // pred_fallthru
      _
    // Predicated region
    $region58: #{tpu_custom_call.1} parent=1 // pred_check
      _
    $region59: #{tpu_custom_call.1} parent=1 // pred_check_branch
      %113 = sbr.rel (0) target = $region61
    $region60: #{tpu_custom_call.1} parent=1 // pred_region
      %114 = dma.done [#allocation12], 512
    $region61: #{tpu_custom_call.1} parent=1 // pred_fallthru
      _
    %v115 = vld [vmem:[#allocation7] sm:$0xff]
    %v116 = vld [vmem:[#allocation7 + $0x8] sm:$0xff]
    %v117 = vld [vmem:[#allocation7 + $0x10] sm:$0xff]
    %v118 = vld [vmem:[#allocation7 + $0x18] sm:$0xff]
    %v119 = vld [vmem:[#allocation7 + $0x20] sm:$0xff]
    %v120 = vld [vmem:[#allocation7 + $0x28] sm:$0xff]
    %v121 = vld [vmem:[#allocation7 + $0x30] sm:$0xff]
    %v122 = vld [vmem:[#allocation7 + $0x38] sm:$0xff]
    %v123 = vld [vmem:[%s3] sm:$0x1]
    %v124 = vld [vmem:[#allocation2] sm:$0xff]
    %v126 = vlaneseq
    %v127 = vshrl.u32 %v126, 7
    %v128 = vsub.s32 0, %v127
    %v129 = vrot.slane %v123, %v128
    %vm131 = vcmask 523264
    %v133 = vsel %vm131, %v124, 0
    %135 = vmatprep.subr.mxu0 0.0
    %136 = vmatpush1.msra.mxu0 %v115
    %137 = vmatprep.subr.mxu0 0.0
    %138 = vmatpush1.msra.mxu0 %v116
    %139 = vmatprep.subr.mxu0 0.0
    %140 = vmatpush1.msra.mxu0 %v117
    %141 = vmatprep.subr.mxu0 0.0
    %142 = vmatpush1.msra.mxu0 %v118
    %143 = vmatprep.subr.mxu0 0.0
    %144 = vmatpush1.msra.mxu0 %v119
    %145 = vmatprep.subr.mxu0 0.0
    %146 = vmatpush1.msra.mxu0 %v120
    %147 = vmatprep.subr.mxu0 0.0
    %148 = vmatpush1.msra.mxu0 %v121
    %149 = vmatprep.subr.mxu0 0.0
    %150 = vmatpush1.msra.mxu0 %v122
    %151 = vmatprep.subr.mxu0 0.0
    %152 = vmatpush1.msra.mxu0 0.0
    %153 = vmatprep.subr.mxu0 0.0
    %154 = vmatpush1.msra.mxu0 0.0
    %155 = vmatprep.subr.mxu0 0.0
    %156 = vmatpush1.msra.mxu0 0.0
    %157 = vmatprep.subr.mxu0 0.0
    %158 = vmatpush1.msra.mxu0 0.0
    %159 = vmatprep.subr.mxu0 0.0
    %160 = vmatpush1.msra.mxu0 0.0
    %161 = vmatprep.subr.mxu0 0.0
    %162 = vmatpush1.msra.mxu0 0.0
    %163 = vmatprep.subr.mxu0 0.0
    %164 = vmatpush1.msra.mxu0 0.0
    %165 = vmatprep.subr.mxu0 0.0
    %166 = vmatpush1.msra.mxu0 0.0
    %167 = vmatprep.subr.mxu0 0.0
    %168 = vmatpush1.msra.mxu0 0.0
    %169 = vmatprep.subr.mxu0 0.0
    %170 = vmatpush1.msra.mxu0 0.0
    %171 = vmatprep.subr.mxu0 0.0
    %172 = vmatpush1.msra.mxu0 0.0
    %173 = vmatprep.subr.mxu0 0.0
    %174 = vmatpush1.msra.mxu0 0.0
    %175 = vmatprep.subr.mxu0 0.0
    %176 = vmatpush1.msra.mxu0 0.0
    %177 = vmatprep.subr.mxu0 0.0
    %178 = vmatpush1.msra.mxu0 0.0
    %179 = vmatprep.subr.mxu0 0.0
    %180 = vmatpush1.msra.mxu0 0.0
    %181 = vmatprep.subr.mxu0 0.0
    %182 = vmatpush1.msra.mxu0 0.0
    %183 = vmatprep.subr.mxu0 0.0
    %184 = vmatpush1.msra.mxu0 0.0
    %185 = vmatprep.subr.mxu0 0.0
    %186 = vmatpush1.msra.mxu0 0.0
    %187 = vmatprep.subr.mxu0 0.0
    %188 = vmatpush1.msra.mxu0 0.0
    %189 = vmatprep.subr.mxu0 0.0
    %190 = vmatpush1.msra.mxu0 0.0
    %191 = vmatprep.subr.mxu0 0.0
    %192 = vmatpush1.msra.mxu0 0.0
    %193 = vmatprep.subr.mxu0 0.0
    %194 = vmatpush1.msra.mxu0 0.0
    %195 = vmatprep.subr.mxu0 0.0
    %196 = vmatpush1.msra.mxu0 0.0
    %197 = vmatprep.subr.mxu0 0.0
    %198 = vmatpush1.msra.mxu0 0.0
    %199 = vmatprep.mubr.f32.mxu0 0.0
    %200 = vmatmul.mubr.f32.gmra.mrb[0].mxu0 %v133
    %v201 = vpop.f32.mrb[0].mxu0
    %v202 = vadd.f32 %v129, %v201
    %v203 = vpop.f32.mrb[0].mxu0
    %204 = vdwg.mxu0
    %s205 = scalar_lea.vmem [#allocation2], 8
    %v206 = vld [vmem:[%s205] sm:$0xff]
    %v208 = vsel %vm131, %v206, 0
    %210 = vmatprep.subr.mxu0 0.0
    %211 = vmatpush1.msra.mxu0 %v115
    %212 = vmatprep.subr.mxu0 0.0
    %213 = vmatpush1.msra.mxu0 %v116
    %214 = vmatprep.subr.mxu0 0.0
    %215 = vmatpush1.msra.mxu0 %v117
    %216 = vmatprep.subr.mxu0 0.0
    %217 = vmatpush1.msra.mxu0 %v118
    %218 = vmatprep.subr.mxu0 0.0
    %219 = vmatpush1.msra.mxu0 %v119
    %220 = vmatprep.subr.mxu0 0.0
    %221 = vmatpush1.msra.mxu0 %v120
    %222 = vmatprep.subr.mxu0 0.0
    %223 = vmatpush1.msra.mxu0 %v121
    %224 = vmatprep.subr.mxu0 0.0
    %225 = vmatpush1.msra.mxu0 %v122
    %226 = vmatprep.subr.mxu0 0.0
    %227 = vmatpush1.msra.mxu0 0.0
    %228 = vmatprep.subr.mxu0 0.0
    %229 = vmatpush1.msra.mxu0 0.0
    %230 = vmatprep.subr.mxu0 0.0
    %231 = vmatpush1.msra.mxu0 0.0
    %232 = vmatprep.subr.mxu0 0.0
    %233 = vmatpush1.msra.mxu0 0.0
    %234 = vmatprep.subr.mxu0 0.0
    %235 = vmatpush1.msra.mxu0 0.0
    %236 = vmatprep.subr.mxu0 0.0
    %237 = vmatpush1.msra.mxu0 0.0
    %238 = vmatprep.subr.mxu0 0.0
    %239 = vmatpush1.msra.mxu0 0.0
    %240 = vmatprep.subr.mxu0 0.0
    %241 = vmatpush1.msra.mxu0 0.0
    %242 = vmatprep.subr.mxu0 0.0
    %243 = vmatpush1.msra.mxu0 0.0
    %244 = vmatprep.subr.mxu0 0.0
    %245 = vmatpush1.msra.mxu0 0.0
    %246 = vmatprep.subr.mxu0 0.0
    %247 = vmatpush1.msra.mxu0 0.0
    %248 = vmatprep.subr.mxu0 0.0
    %249 = vmatpush1.msra.mxu0 0.0
    %250 = vmatprep.subr.mxu0 0.0
    %251 = vmatpush1.msra.mxu0 0.0
    %252 = vmatprep.subr.mxu0 0.0
    %253 = vmatpush1.msra.mxu0 0.0
    %254 = vmatprep.subr.mxu0 0.0
    %255 = vmatpush1.msra.mxu0 0.0
    %256 = vmatprep.subr.mxu0 0.0
    %257 = vmatpush1.msra.mxu0 0.0
    %258 = vmatprep.subr.mxu0 0.0
    %259 = vmatpush1.msra.mxu0 0.0
    %260 = vmatprep.subr.mxu0 0.0
    %261 = vmatpush1.msra.mxu0 0.0
    %262 = vmatprep.subr.mxu0 0.0
    %263 = vmatpush1.msra.mxu0 0.0
    %264 = vmatprep.subr.mxu0 0.0
    %265 = vmatpush1.msra.mxu0 0.0
    %266 = vmatprep.subr.mxu0 0.0
    %267 = vmatpush1.msra.mxu0 0.0
    %268 = vmatprep.subr.mxu0 0.0
    %269 = vmatpush1.msra.mxu0 0.0
    %270 = vmatprep.subr.mxu0 0.0
    %271 = vmatpush1.msra.mxu0 0.0
    %272 = vmatprep.subr.mxu0 0.0
    %273 = vmatpush1.msra.mxu0 0.0
    %274 = vmatprep.mubr.f32.mxu0 0.0
    %275 = vmatmul.mubr.f32.gmra.mrb[0].mxu0 %v208
    %v276 = vpop.f32.mrb[0].mxu0
    %v277 = vadd.f32 %v129, %v276
    %v278 = vpop.f32.mrb[0].mxu0
    %279 = vdwg.mxu0
    %v280 = vld [vmem:[#allocation5] sm:$0xff]
    %s281 = scalar_lea.vmem [#allocation5], 8
    %v282 = vld [vmem:[%s281] sm:$0xff]
    %v284 = vrot.slane %v282, 7
    %vm286 = vcmask 1040384
    %v287 = vsel %vm286, %v280, %v284
    %v289 = vsel %vm131, %v287, 0
    %291 = vmatprep.subr.mxu0 0.0
    %292 = vmatpush1.msra.mxu0 %v115
    %293 = vmatprep.subr.mxu0 0.0
    %294 = vmatpush1.msra.mxu0 %v116
    %295 = vmatprep.subr.mxu0 0.0
    %296 = vmatpush1.msra.mxu0 %v117
    %297 = vmatprep.subr.mxu0 0.0
    %298 = vmatpush1.msra.mxu0 %v118
    %299 = vmatprep.subr.mxu0 0.0
    %300 = vmatpush1.msra.mxu0 %v119
    %301 = vmatprep.subr.mxu0 0.0
    %302 = vmatpush1.msra.mxu0 %v120
    %303 = vmatprep.subr.mxu0 0.0
    %304 = vmatpush1.msra.mxu0 %v121
    %305 = vmatprep.subr.mxu0 0.0
    %306 = vmatpush1.msra.mxu0 %v122
    %307 = vmatprep.subr.mxu0 0.0
    %308 = vmatpush1.msra.mxu0 0.0
    %309 = vmatprep.subr.mxu0 0.0
    %310 = vmatpush1.msra.mxu0 0.0
    %311 = vmatprep.subr.mxu0 0.0
    %312 = vmatpush1.msra.mxu0 0.0
    %313 = vmatprep.subr.mxu0 0.0
    %314 = vmatpush1.msra.mxu0 0.0
    %315 = vmatprep.subr.mxu0 0.0
    %316 = vmatpush1.msra.mxu0 0.0
    %317 = vmatprep.subr.mxu0 0.0
    %318 = vmatpush1.msra.mxu0 0.0
    %319 = vmatprep.subr.mxu0 0.0
    %320 = vmatpush1.msra.mxu0 0.0
    %321 = vmatprep.subr.mxu0 0.0
    %322 = vmatpush1.msra.mxu0 0.0
    %323 = vmatprep.subr.mxu0 0.0
    %324 = vmatpush1.msra.mxu0 0.0
    %325 = vmatprep.subr.mxu0 0.0
    %326 = vmatpush1.msra.mxu0 0.0
    %327 = vmatprep.subr.mxu0 0.0
    %328 = vmatpush1.msra.mxu0 0.0
    %329 = vmatprep.subr.mxu0 0.0
    %330 = vmatpush1.msra.mxu0 0.0
    %331 = vmatprep.subr.mxu0 0.0
    %332 = vmatpush1.msra.mxu0 0.0
    %333 = vmatprep.subr.mxu0 0.0
    %334 = vmatpush1.msra.mxu0 0.0
    %335 = vmatprep.subr.mxu0 0.0
    %336 = vmatpush1.msra.mxu0 0.0
    %337 = vmatprep.subr.mxu0 0.0
    %338 = vmatpush1.msra.mxu0 0.0
    %339 = vmatprep.subr.mxu0 0.0
    %340 = vmatpush1.msra.mxu0 0.0
    %341 = vmatprep.subr.mxu0 0.0
    %342 = vmatpush1.msra.mxu0 0.0
    %343 = vmatprep.subr.mxu0 0.0
    %344 = vmatpush1.msra.mxu0 0.0
    %345 = vmatprep.subr.mxu0 0.0
    %346 = vmatpush1.msra.mxu0 0.0
    %347 = vmatprep.subr.mxu0 0.0
    %348 = vmatpush1.msra.mxu0 0.0
    %349 = vmatprep.subr.mxu0 0.0
    %350 = vmatpush1.msra.mxu0 0.0
    %351 = vmatprep.subr.mxu0 0.0
    %352 = vmatpush1.msra.mxu0 0.0
    %353 = vmatprep.subr.mxu0 0.0
    %354 = vmatpush1.msra.mxu0 0.0
    %355 = vmatprep.mubr.f32.mxu0 0.0
    %356 = vmatmul.mubr.f32.gmra.mrb[0].mxu0 %v289
    %v357 = vpop.f32.mrb[0].mxu0
    %v358 = vadd.f32 %v129, %v357
    %v359 = vpop.f32.mrb[0].mxu0
    %360 = vdwg.mxu0
    %v361 = vld [vmem:[#allocation8] sm:$0xff]
    %v362 = vld [vmem:[#allocation8 + $0x8] sm:$0xff]
    %v363 = vld [vmem:[#allocation8 + $0x10] sm:$0xff]
    %v364 = vld [vmem:[#allocation8 + $0x18] sm:$0xff]
    %v366 = vrot.slane %v277, 7
    %v368 = vsel %vm286, %v202, %v366
    %v369 = vxor.u32 %v368, 2147483648
    %v370 = vmul.f32 %v369, 1.442695
    %v371 = vpow.pop %v370
    %v372 = vadd.f32 %v371, 1.0
    %v373 = vrcp.pop %v372
    %v374 = vmul.f32 1.0, %v373
    %376 = vrot.lane.b32.xlu0 %v368, 32
    %v377 = vpop.permute.xlu0 %376
    %v379 = vmul.f32 %v374, %v377
    %381 = vrot.lane.b32.xlu0 %v379, 64
    %v382 = vpop.permute.xlu0 %381
    %v384 = vadd.f32 %v368, %v382
    %v385 = vtanh.pop %v384
    %v386 = vsub.f32 1.0, %v374
    %388 = vrot.lane.b32.xlu0 %v385, 96
    %v389 = vpop.permute.xlu0 %388
    %v391 = vmul.f32 %v386, %v389
    %v392 = vmul.f32 %v374, 0.0
    %v393 = vadd.f32 %v391, %v392
    %v395 = vrot.slane %v202, 1
    %v397 = vsel %vm286, %v395, %v277
    %399 = vrot.lane.b32.xlu0 %v393, 96
    %v400 = vpop.permute.xlu0 %399
    %vm401 = vcmask 261120
    %v402 = vsel %vm401, %v400, 0
    %404 = vmatprep.subr.mxu0 0.0
    %405 = vmatpush1.msra.mxu0 %v361
    %406 = vmatprep.subr.mxu0 0.0
    %407 = vmatpush1.msra.mxu0 %v362
    %408 = vmatprep.subr.mxu0 0.0
    %409 = vmatpush1.msra.mxu0 %v363
    %410 = vmatprep.subr.mxu0 0.0
    %411 = vmatpush1.msra.mxu0 %v364
    %412 = vmatprep.subr.mxu0 0.0
    %413 = vmatpush1.msra.mxu0 0.0
    %414 = vmatprep.subr.mxu0 0.0
    %415 = vmatpush1.msra.mxu0 0.0
    %416 = vmatprep.subr.mxu0 0.0
    %417 = vmatpush1.msra.mxu0 0.0
    %418 = vmatprep.subr.mxu0 0.0
    %419 = vmatpush1.msra.mxu0 0.0
    %420 = vmatprep.subr.mxu0 0.0
    %421 = vmatpush1.msra.mxu0 0.0
    %422 = vmatprep.subr.mxu0 0.0
    %423 = vmatpush1.msra.mxu0 0.0
    %424 = vmatprep.subr.mxu0 0.0
    %425 = vmatpush1.msra.mxu0 0.0
    %426 = vmatprep.subr.mxu0 0.0
    %427 = vmatpush1.msra.mxu0 0.0
    %428 = vmatprep.subr.mxu0 0.0
    %429 = vmatpush1.msra.mxu0 0.0
    %430 = vmatprep.subr.mxu0 0.0
    %431 = vmatpush1.msra.mxu0 0.0
    %432 = vmatprep.subr.mxu0 0.0
    %433 = vmatpush1.msra.mxu0 0.0
    %434 = vmatprep.subr.mxu0 0.0
    %435 = vmatpush1.msra.mxu0 0.0
    %436 = vmatprep.subr.mxu0 0.0
    %437 = vmatpush1.msra.mxu0 0.0
    %438 = vmatprep.subr.mxu0 0.0
    %439 = vmatpush1.msra.mxu0 0.0
    %440 = vmatprep.subr.mxu0 0.0
    %441 = vmatpush1.msra.mxu0 0.0
    %442 = vmatprep.subr.mxu0 0.0
    %443 = vmatpush1.msra.mxu0 0.0
    %444 = vmatprep.subr.mxu0 0.0
    %445 = vmatpush1.msra.mxu0 0.0
    %446 = vmatprep.subr.mxu0 0.0
    %447 = vmatpush1.msra.mxu0 0.0
    %448 = vmatprep.subr.mxu0 0.0
    %449 = vmatpush1.msra.mxu0 0.0
    %450 = vmatprep.subr.mxu0 0.0
    %451 = vmatpush1.msra.mxu0 0.0
    %452 = vmatprep.subr.mxu0 0.0
    %453 = vmatpush1.msra.mxu0 0.0
    %454 = vmatprep.subr.mxu0 0.0
    %455 = vmatpush1.msra.mxu0 0.0
    %456 = vmatprep.subr.mxu0 0.0
    %457 = vmatpush1.msra.mxu0 0.0
    %458 = vmatprep.subr.mxu0 0.0
    %459 = vmatpush1.msra.mxu0 0.0
    %460 = vmatprep.subr.mxu0 0.0
    %461 = vmatpush1.msra.mxu0 0.0
    %462 = vmatprep.subr.mxu0 0.0
    %463 = vmatpush1.msra.mxu0 0.0
    %464 = vmatprep.subr.mxu0 0.0
    %465 = vmatpush1.msra.mxu0 0.0
    %466 = vmatprep.subr.mxu0 0.0
    %467 = vmatpush1.msra.mxu0 0.0
    %468 = vmatprep.mubr.f32.mxu0 0.0
    %469 = vmatmul.mubr.f32.gmra.mrb[0].mxu0 %v402
    %v470 = vpop.f32.mrb[0].mxu0
    %v471 = vadd.f32 0.0, %v470
    %v472 = vpop.f32.mrb[0].mxu0
    %473 = vdwg.mxu0
    %v474 = vadd.f32 %v397, %v471
    %v475 = vxor.u32 %v474, 2147483648
    %v476 = vmul.f32 %v475, 1.442695
    %v477 = vpow.pop %v476
    %v478 = vadd.f32 %v477, 1.0
    %v479 = vrcp.pop %v478
    %v480 = vmul.f32 1.0, %v479
    %482 = vrot.lane.b32.xlu0 %v474, 32
    %v483 = vpop.permute.xlu0 %482
    %v485 = vmul.f32 %v480, %v483
    %487 = vrot.lane.b32.xlu0 %v485, 64
    %v488 = vpop.permute.xlu0 %487
    %v490 = vadd.f32 %v474, %v488
    %v491 = vtanh.pop %v490
    %v492 = vsub.f32 1.0, %v480
    %494 = vrot.lane.b32.xlu0 %v491, 96
    %v495 = vpop.permute.xlu0 %494
    %v497 = vmul.f32 %v492, %v495
    %v498 = vmul.f32 %v480, %v393
    %v499 = vadd.f32 %v497, %v498
    %v500 = vrot.slane %v202, 2
    %v502 = vrot.slane %v277, 1
    %v504 = vsel %vm286, %v500, %v502
    %506 = vrot.lane.b32.xlu0 %v499, 96
    %v507 = vpop.permute.xlu0 %506
    %v508 = vsel %vm401, %v507, 0
    %510 = vmatprep.subr.mxu0 0.0
    %511 = vmatpush1.msra.mxu0 %v361
    %512 = vmatprep.subr.mxu0 0.0
    %513 = vmatpush1.msra.mxu0 %v362
    %514 = vmatprep.subr.mxu0 0.0
    %515 = vmatpush1.msra.mxu0 %v363
    %516 = vmatprep.subr.mxu0 0.0
    %517 = vmatpush1.msra.mxu0 %v364
    %518 = vmatprep.subr.mxu0 0.0
    %519 = vmatpush1.msra.mxu0 0.0
    %520 = vmatprep.subr.mxu0 0.0
    %521 = vmatpush1.msra.mxu0 0.0
    %522 = vmatprep.subr.mxu0 0.0
    %523 = vmatpush1.msra.mxu0 0.0
    %524 = vmatprep.subr.mxu0 0.0
    %525 = vmatpush1.msra.mxu0 0.0
    %526 = vmatprep.subr.mxu0 0.0
    %527 = vmatpush1.msra.mxu0 0.0
    %528 = vmatprep.subr.mxu0 0.0
    %529 = vmatpush1.msra.mxu0 0.0
    %530 = vmatprep.subr.mxu0 0.0
    %531 = vmatpush1.msra.mxu0 0.0
    %532 = vmatprep.subr.mxu0 0.0
    %533 = vmatpush1.msra.mxu0 0.0
    %534 = vmatprep.subr.mxu0 0.0
    %535 = vmatpush1.msra.mxu0 0.0
    %536 = vmatprep.subr.mxu0 0.0
    %537 = vmatpush1.msra.mxu0 0.0
    %538 = vmatprep.subr.mxu0 0.0
    %539 = vmatpush1.msra.mxu0 0.0
    %540 = vmatprep.subr.mxu0 0.0
    %541 = vmatpush1.msra.mxu0 0.0
    %542 = vmatprep.subr.mxu0 0.0
    %543 = vmatpush1.msra.mxu0 0.0
    %544 = vmatprep.subr.mxu0 0.0
    %545 = vmatpush1.msra.mxu0 0.0
    %546 = vmatprep.subr.mxu0 0.0
    %547 = vmatpush1.msra.mxu0 0.0
    %548 = vmatprep.subr.mxu0 0.0
    %549 = vmatpush1.msra.mxu0 0.0
    %550 = vmatprep.subr.mxu0 0.0
    %551 = vmatpush1.msra.mxu0 0.0
    %552 = vmatprep.subr.mxu0 0.0
    %553 = vmatpush1.msra.mxu0 0.0
    %554 = vmatprep.subr.mxu0 0.0
    %555 = vmatpush1.msra.mxu0 0.0
    %556 = vmatprep.subr.mxu0 0.0
    %557 = vmatpush1.msra.mxu0 0.0
    %558 = vmatprep.subr.mxu0 0.0
    %559 = vmatpush1.msra.mxu0 0.0
    %560 = vmatprep.subr.mxu0 0.0
    %561 = vmatpush1.msra.mxu0 0.0
    %562 = vmatprep.subr.mxu0 0.0
    %563 = vmatpush1.msra.mxu0 0.0
    %564 = vmatprep.subr.mxu0 0.0
    %565 = vmatpush1.msra.mxu0 0.0
    %566 = vmatprep.subr.mxu0 0.0
    %567 = vmatpush1.msra.mxu0 0.0
    %568 = vmatprep.subr.mxu0 0.0
    %569 = vmatpush1.msra.mxu0 0.0
    %570 = vmatprep.subr.mxu0 0.0
    %571 = vmatpush1.msra.mxu0 0.0
    %572 = vmatprep.subr.mxu0 0.0
    %573 = vmatpush1.msra.mxu0 0.0
    %574 = vmatprep.mubr.f32.mxu0 0.0
    %575 = vmatmul.mubr.f32.gmra.mrb[0].mxu0 %v508
    %v576 = vpop.f32.mrb[0].mxu0
    %v577 = vadd.f32 0.0, %v576
    %v578 = vpop.f32.mrb[0].mxu0
    %579 = vdwg.mxu0
    %v580 = vadd.f32 %v504, %v577
    %v581 = vxor.u32 %v580, 2147483648
    %v582 = vmul.f32 %v581, 1.442695
    %v583 = vpow.pop %v582
    %v584 = vadd.f32 %v583, 1.0
    %v585 = vrcp.pop %v584
    %v586 = vmul.f32 1.0, %v585
    %588 = vrot.lane.b32.xlu0 %v580, 32
    %v589 = vpop.permute.xlu0 %588
    %v591 = vmul.f32 %v586, %v589
    %593 = vrot.lane.b32.xlu0 %v591, 64
    %v594 = vpop.permute.xlu0 %593
    %v596 = vadd.f32 %v580, %v594
    %v597 = vtanh.pop %v596
    %v598 = vsub.f32 1.0, %v586
    %600 = vrot.lane.b32.xlu0 %v597, 96
    %v601 = vpop.permute.xlu0 %600
    %v603 = vmul.f32 %v598, %v601
    %v604 = vmul.f32 %v586, %v499
    %v605 = vadd.f32 %v603, %v604
    %v606 = vrot.slane %v202, 3
    %v608 = vrot.slane %v277, 2
    %v610 = vsel %vm286, %v606, %v608
    %612 = vrot.lane.b32.xlu0 %v605, 96
    %v613 = vpop.permute.xlu0 %612
    %v614 = vsel %vm401, %v613, 0
    %616 = vmatprep.subr.mxu0 0.0
    %617 = vmatpush1.msra.mxu0 %v361
    %618 = vmatprep.subr.mxu0 0.0
    %619 = vmatpush1.msra.mxu0 %v362
    %620 = vmatprep.subr.mxu0 0.0
    %621 = vmatpush1.msra.mxu0 %v363
    %622 = vmatprep.subr.mxu0 0.0
    %623 = vmatpush1.msra.mxu0 %v364
    %624 = vmatprep.subr.mxu0 0.0
    %625 = vmatpush1.msra.mxu0 0.0
    %626 = vmatprep.subr.mxu0 0.0
    %627 = vmatpush1.msra.mxu0 0.0
    %628 = vmatprep.subr.mxu0 0.0
    %629 = vmatpush1.msra.mxu0 0.0
    %630 = vmatprep.subr.mxu0 0.0
    %631 = vmatpush1.msra.mxu0 0.0
    %632 = vmatprep.subr.mxu0 0.0
    %633 = vmatpush1.msra.mxu0 0.0
    %634 = vmatprep.subr.mxu0 0.0
    %635 = vmatpush1.msra.mxu0 0.0
    %636 = vmatprep.subr.mxu0 0.0
    %637 = vmatpush1.msra.mxu0 0.0
    %638 = vmatprep.subr.mxu0 0.0
    %639 = vmatpush1.msra.mxu0 0.0
    %640 = vmatprep.subr.mxu0 0.0
    %641 = vmatpush1.msra.mxu0 0.0
    %642 = vmatprep.subr.mxu0 0.0
    %643 = vmatpush1.msra.mxu0 0.0
    %644 = vmatprep.subr.mxu0 0.0
    %645 = vmatpush1.msra.mxu0 0.0
    %646 = vmatprep.subr.mxu0 0.0
    %647 = vmatpush1.msra.mxu0 0.0
    %648 = vmatprep.subr.mxu0 0.0
    %649 = vmatpush1.msra.mxu0 0.0
    %650 = vmatprep.subr.mxu0 0.0
    %651 = vmatpush1.msra.mxu0 0.0
    %652 = vmatprep.subr.mxu0 0.0
    %653 = vmatpush1.msra.mxu0 0.0
    %654 = vmatprep.subr.mxu0 0.0
    %655 = vmatpush1.msra.mxu0 0.0
    %656 = vmatprep.subr.mxu0 0.0
    %657 = vmatpush1.msra.mxu0 0.0
    %658 = vmatprep.subr.mxu0 0.0
    %659 = vmatpush1.msra.mxu0 0.0
    %660 = vmatprep.subr.mxu0 0.0
    %661 = vmatpush1.msra.mxu0 0.0
    %662 = vmatprep.subr.mxu0 0.0
    %663 = vmatpush1.msra.mxu0 0.0
    %664 = vmatprep.subr.mxu0 0.0
    %665 = vmatpush1.msra.mxu0 0.0
    %666 = vmatprep.subr.mxu0 0.0
    %667 = vmatpush1.msra.mxu0 0.0
    %668 = vmatprep.subr.mxu0 0.0
    %669 = vmatpush1.msra.mxu0 0.0
    %670 = vmatprep.subr.mxu0 0.0
    %671 = vmatpush1.msra.mxu0 0.0
    %672 = vmatprep.subr.mxu0 0.0
    %673 = vmatpush1.msra.mxu0 0.0
    %674 = vmatprep.subr.mxu0 0.0
    %675 = vmatpush1.msra.mxu0 0.0
    %676 = vmatprep.subr.mxu0 0.0
    %677 = vmatpush1.msra.mxu0 0.0
    %678 = vmatprep.subr.mxu0 0.0
    %679 = vmatpush1.msra.mxu0 0.0
    %680 = vmatprep.mubr.f32.mxu0 0.0
    %681 = vmatmul.mubr.f32.gmra.mrb[0].mxu0 %v614
    %v682 = vpop.f32.mrb[0].mxu0
    %v683 = vadd.f32 0.0, %v682
    %v684 = vpop.f32.mrb[0].mxu0
    %685 = vdwg.mxu0
    %v686 = vadd.f32 %v610, %v683
    %v687 = vxor.u32 %v686, 2147483648
    %v688 = vmul.f32 %v687, 1.442695
    %v689 = vpow.pop %v688
    %v690 = vadd.f32 %v689, 1.0
    %v691 = vrcp.pop %v690
    %v692 = vmul.f32 1.0, %v691
    %694 = vrot.lane.b32.xlu0 %v686, 32
    %v695 = vpop.permute.xlu0 %694
    %v697 = vmul.f32 %v692, %v695
    %699 = vrot.lane.b32.xlu0 %v697, 64
    %v700 = vpop.permute.xlu0 %699
    %v702 = vadd.f32 %v686, %v700
    %v703 = vtanh.pop %v702
    %v704 = vsub.f32 1.0, %v692
    %706 = vrot.lane.b32.xlu0 %v703, 96
    %v707 = vpop.permute.xlu0 %706
    %v709 = vmul.f32 %v704, %v707
    %v710 = vmul.f32 %v692, %v605
    %v711 = vadd.f32 %v709, %v710
    %v712 = vrot.slane %v202, 4
    %v714 = vrot.slane %v277, 3
    %v716 = vsel %vm286, %v712, %v714
    %718 = vrot.lane.b32.xlu0 %v711, 96
    %v719 = vpop.permute.xlu0 %718
    %v720 = vsel %vm401, %v719, 0
    %722 = vmatprep.subr.mxu0 0.0
    %723 = vmatpush1.msra.mxu0 %v361
    %724 = vmatprep.subr.mxu0 0.0
    %725 = vmatpush1.msra.mxu0 %v362
    %726 = vmatprep.subr.mxu0 0.0
    %727 = vmatpush1.msra.mxu0 %v363
    %728 = vmatprep.subr.mxu0 0.0
    %729 = vmatpush1.msra.mxu0 %v364
    %730 = vmatprep.subr.mxu0 0.0
    %731 = vmatpush1.msra.mxu0 0.0
    %732 = vmatprep.subr.mxu0 0.0
    %733 = vmatpush1.msra.mxu0 0.0
    %734 = vmatprep.subr.mxu0 0.0
    %735 = vmatpush1.msra.mxu0 0.0
    %736 = vmatprep.subr.mxu0 0.0
    %737 = vmatpush1.msra.mxu0 0.0
    %738 = vmatprep.subr.mxu0 0.0
    %739 = vmatpush1.msra.mxu0 0.0
    %740 = vmatprep.subr.mxu0 0.0
    %741 = vmatpush1.msra.mxu0 0.0
    %742 = vmatprep.subr.mxu0 0.0
    %743 = vmatpush1.msra.mxu0 0.0
    %744 = vmatprep.subr.mxu0 0.0
    %745 = vmatpush1.msra.mxu0 0.0
    %746 = vmatprep.subr.mxu0 0.0
    %747 = vmatpush1.msra.mxu0 0.0
    %748 = vmatprep.subr.mxu0 0.0
    %749 = vmatpush1.msra.mxu0 0.0
    %750 = vmatprep.subr.mxu0 0.0
    %751 = vmatpush1.msra.mxu0 0.0
    %752 = vmatprep.subr.mxu0 0.0
    %753 = vmatpush1.msra.mxu0 0.0
    %754 = vmatprep.subr.mxu0 0.0
    %755 = vmatpush1.msra.mxu0 0.0
    %756 = vmatprep.subr.mxu0 0.0
    %757 = vmatpush1.msra.mxu0 0.0
    %758 = vmatprep.subr.mxu0 0.0
    %759 = vmatpush1.msra.mxu0 0.0
    %760 = vmatprep.subr.mxu0 0.0
    %761 = vmatpush1.msra.mxu0 0.0
    %762 = vmatprep.subr.mxu0 0.0
    %763 = vmatpush1.msra.mxu0 0.0
    %764 = vmatprep.subr.mxu0 0.0
    %765 = vmatpush1.msra.mxu0 0.0
    %766 = vmatprep.subr.mxu0 0.0
    %767 = vmatpush1.msra.mxu0 0.0
    %768 = vmatprep.subr.mxu0 0.0
    %769 = vmatpush1.msra.mxu0 0.0
    %770 = vmatprep.subr.mxu0 0.0
    %771 = vmatpush1.msra.mxu0 0.0
    %772 = vmatprep.subr.mxu0 0.0
    %773 = vmatpush1.msra.mxu0 0.0
    %774 = vmatprep.subr.mxu0 0.0
    %775 = vmatpush1.msra.mxu0 0.0
    %776 = vmatprep.subr.mxu0 0.0
    %777 = vmatpush1.msra.mxu0 0.0
    %778 = vmatprep.subr.mxu0 0.0
    %779 = vmatpush1.msra.mxu0 0.0
    %780 = vmatprep.subr.mxu0 0.0
    %781 = vmatpush1.msra.mxu0 0.0
    %782 = vmatprep.subr.mxu0 0.0
    %783 = vmatpush1.msra.mxu0 0.0
    %784 = vmatprep.subr.mxu0 0.0
    %785 = vmatpush1.msra.mxu0 0.0
    %786 = vmatprep.mubr.f32.mxu0 0.0
    %787 = vmatmul.mubr.f32.gmra.mrb[0].mxu0 %v720
    %v788 = vpop.f32.mrb[0].mxu0
    %v789 = vadd.f32 0.0, %v788
    %v790 = vpop.f32.mrb[0].mxu0
    %791 = vdwg.mxu0
    %v792 = vadd.f32 %v716, %v789
    %v793 = vxor.u32 %v792, 2147483648
    %v794 = vmul.f32 %v793, 1.442695
    %v795 = vpow.pop %v794
    %v796 = vadd.f32 %v795, 1.0
    %v797 = vrcp.pop %v796
    %v798 = vmul.f32 1.0, %v797
    %800 = vrot.lane.b32.xlu0 %v792, 32
    %v801 = vpop.permute.xlu0 %800
    %v803 = vmul.f32 %v798, %v801
    %805 = vrot.lane.b32.xlu0 %v803, 64
    %v806 = vpop.permute.xlu0 %805
    %v808 = vadd.f32 %v792, %v806
    %v809 = vtanh.pop %v808
    %v810 = vsub.f32 1.0, %v798
    %812 = vrot.lane.b32.xlu0 %v809, 96
    %v813 = vpop.permute.xlu0 %812
    %v815 = vmul.f32 %v810, %v813
    %v816 = vmul.f32 %v798, %v711
    %v817 = vadd.f32 %v815, %v816
    %v818 = vrot.slane %v202, 5
    %v820 = vrot.slane %v277, 4
    %v822 = vsel %vm286, %v818, %v820
    %824 = vrot.lane.b32.xlu0 %v817, 96
    %v825 = vpop.permute.xlu0 %824
    %v826 = vsel %vm401, %v825, 0
    %828 = vmatprep.subr.mxu0 0.0
    %829 = vmatpush1.msra.mxu0 %v361
    %830 = vmatprep.subr.mxu0 0.0
    %831 = vmatpush1.msra.mxu0 %v362
    %832 = vmatprep.subr.mxu0 0.0
    %833 = vmatpush1.msra.mxu0 %v363
    %834 = vmatprep.subr.mxu0 0.0
    %835 = vmatpush1.msra.mxu0 %v364
    %836 = vmatprep.subr.mxu0 0.0
    %837 = vmatpush1.msra.mxu0 0.0
    %838 = vmatprep.subr.mxu0 0.0
    %839 = vmatpush1.msra.mxu0 0.0
    %840 = vmatprep.subr.mxu0 0.0
    %841 = vmatpush1.msra.mxu0 0.0
    %842 = vmatprep.subr.mxu0 0.0
    %843 = vmatpush1.msra.mxu0 0.0
    %844 = vmatprep.subr.mxu0 0.0
    %845 = vmatpush1.msra.mxu0 0.0
    %846 = vmatprep.subr.mxu0 0.0
    %847 = vmatpush1.msra.mxu0 0.0
    %848 = vmatprep.subr.mxu0 0.0
    %849 = vmatpush1.msra.mxu0 0.0
    %850 = vmatprep.subr.mxu0 0.0
    %851 = vmatpush1.msra.mxu0 0.0
    %852 = vmatprep.subr.mxu0 0.0
    %853 = vmatpush1.msra.mxu0 0.0
    %854 = vmatprep.subr.mxu0 0.0
    %855 = vmatpush1.msra.mxu0 0.0
    %856 = vmatprep.subr.mxu0 0.0
    %857 = vmatpush1.msra.mxu0 0.0
    %858 = vmatprep.subr.mxu0 0.0
    %859 = vmatpush1.msra.mxu0 0.0
    %860 = vmatprep.subr.mxu0 0.0
    %861 = vmatpush1.msra.mxu0 0.0
    %862 = vmatprep.subr.mxu0 0.0
    %863 = vmatpush1.msra.mxu0 0.0
    %864 = vmatprep.subr.mxu0 0.0
    %865 = vmatpush1.msra.mxu0 0.0
    %866 = vmatprep.subr.mxu0 0.0
    %867 = vmatpush1.msra.mxu0 0.0
    %868 = vmatprep.subr.mxu0 0.0
    %869 = vmatpush1.msra.mxu0 0.0
    %870 = vmatprep.subr.mxu0 0.0
    %871 = vmatpush1.msra.mxu0 0.0
    %872 = vmatprep.subr.mxu0 0.0
    %873 = vmatpush1.msra.mxu0 0.0
    %874 = vmatprep.subr.mxu0 0.0
    %875 = vmatpush1.msra.mxu0 0.0
    %876 = vmatprep.subr.mxu0 0.0
    %877 = vmatpush1.msra.mxu0 0.0
    %878 = vmatprep.subr.mxu0 0.0
    %879 = vmatpush1.msra.mxu0 0.0
    %880 = vmatprep.subr.mxu0 0.0
    %881 = vmatpush1.msra.mxu0 0.0
    %882 = vmatprep.subr.mxu0 0.0
    %883 = vmatpush1.msra.mxu0 0.0
    %884 = vmatprep.subr.mxu0 0.0
    %885 = vmatpush1.msra.mxu0 0.0
    %886 = vmatprep.subr.mxu0 0.0
    %887 = vmatpush1.msra.mxu0 0.0
    %888 = vmatprep.subr.mxu0 0.0
    %889 = vmatpush1.msra.mxu0 0.0
    %890 = vmatprep.subr.mxu0 0.0
    %891 = vmatpush1.msra.mxu0 0.0
    %892 = vmatprep.mubr.f32.mxu0 0.0
    %893 = vmatmul.mubr.f32.gmra.mrb[0].mxu0 %v826
    %v894 = vpop.f32.mrb[0].mxu0
    %v895 = vadd.f32 0.0, %v894
    %v896 = vpop.f32.mrb[0].mxu0
    %897 = vdwg.mxu0
    %v898 = vadd.f32 %v822, %v895
    %v899 = vxor.u32 %v898, 2147483648
    %v900 = vmul.f32 %v899, 1.442695
    %v901 = vpow.pop %v900
    %v902 = vadd.f32 %v901, 1.0
    %v903 = vrcp.pop %v902
    %v904 = vmul.f32 1.0, %v903
    %906 = vrot.lane.b32.xlu0 %v898, 32
    %v907 = vpop.permute.xlu0 %906
    %v909 = vmul.f32 %v904, %v907
    %911 = vrot.lane.b32.xlu0 %v909, 64
    %v912 = vpop.permute.xlu0 %911
    %v914 = vadd.f32 %v898, %v912
    %v915 = vtanh.pop %v914
    %v916 = vsub.f32 1.0, %v904
    %918 = vrot.lane.b32.xlu0 %v915, 96
    %v919 = vpop.permute.xlu0 %918
    %v921 = vmul.f32 %v916, %v919
    %v922 = vmul.f32 %v904, %v817
    %v923 = vadd.f32 %v921, %v922
    %v924 = vrot.slane %v202, 6
    %v926 = vrot.slane %v277, 5
    %v928 = vsel %vm286, %v924, %v926
    %930 = vrot.lane.b32.xlu0 %v923, 96
    %v931 = vpop.permute.xlu0 %930
    %v932 = vsel %vm401, %v931, 0
    %934 = vmatprep.subr.mxu0 0.0
    %935 = vmatpush1.msra.mxu0 %v361
    %936 = vmatprep.subr.mxu0 0.0
    %937 = vmatpush1.msra.mxu0 %v362
    %938 = vmatprep.subr.mxu0 0.0
    %939 = vmatpush1.msra.mxu0 %v363
    %940 = vmatprep.subr.mxu0 0.0
    %941 = vmatpush1.msra.mxu0 %v364
    %942 = vmatprep.subr.mxu0 0.0
    %943 = vmatpush1.msra.mxu0 0.0
    %944 = vmatprep.subr.mxu0 0.0
    %945 = vmatpush1.msra.mxu0 0.0
    %946 = vmatprep.subr.mxu0 0.0
    %947 = vmatpush1.msra.mxu0 0.0
    %948 = vmatprep.subr.mxu0 0.0
    %949 = vmatpush1.msra.mxu0 0.0
    %950 = vmatprep.subr.mxu0 0.0
    %951 = vmatpush1.msra.mxu0 0.0
    %952 = vmatprep.subr.mxu0 0.0
    %953 = vmatpush1.msra.mxu0 0.0
    %954 = vmatprep.subr.mxu0 0.0
    %955 = vmatpush1.msra.mxu0 0.0
    %956 = vmatprep.subr.mxu0 0.0
    %957 = vmatpush1.msra.mxu0 0.0
    %958 = vmatprep.subr.mxu0 0.0
    %959 = vmatpush1.msra.mxu0 0.0
    %960 = vmatprep.subr.mxu0 0.0
    %961 = vmatpush1.msra.mxu0 0.0
    %962 = vmatprep.subr.mxu0 0.0
    %963 = vmatpush1.msra.mxu0 0.0
    %964 = vmatprep.subr.mxu0 0.0
    %965 = vmatpush1.msra.mxu0 0.0
    %966 = vmatprep.subr.mxu0 0.0
    %967 = vmatpush1.msra.mxu0 0.0
    %968 = vmatprep.subr.mxu0 0.0
    %969 = vmatpush1.msra.mxu0 0.0
    %970 = vmatprep.subr.mxu0 0.0
    %971 = vmatpush1.msra.mxu0 0.0
    %972 = vmatprep.subr.mxu0 0.0
    %973 = vmatpush1.msra.mxu0 0.0
    %974 = vmatprep.subr.mxu0 0.0
    %975 = vmatpush1.msra.mxu0 0.0
    %976 = vmatprep.subr.mxu0 0.0
    %977 = vmatpush1.msra.mxu0 0.0
    %978 = vmatprep.subr.mxu0 0.0
    %979 = vmatpush1.msra.mxu0 0.0
    %980 = vmatprep.subr.mxu0 0.0
    %981 = vmatpush1.msra.mxu0 0.0
    %982 = vmatprep.subr.mxu0 0.0
    %983 = vmatpush1.msra.mxu0 0.0
    %984 = vmatprep.subr.mxu0 0.0
    %985 = vmatpush1.msra.mxu0 0.0
    %986 = vmatprep.subr.mxu0 0.0
    %987 = vmatpush1.msra.mxu0 0.0
    %988 = vmatprep.subr.mxu0 0.0
    %989 = vmatpush1.msra.mxu0 0.0
    %990 = vmatprep.subr.mxu0 0.0
    %991 = vmatpush1.msra.mxu0 0.0
    %992 = vmatprep.subr.mxu0 0.0
    %993 = vmatpush1.msra.mxu0 0.0
    %994 = vmatprep.subr.mxu0 0.0
    %995 = vmatpush1.msra.mxu0 0.0
    %996 = vmatprep.subr.mxu0 0.0
    %997 = vmatpush1.msra.mxu0 0.0
    %998 = vmatprep.mubr.f32.mxu0 0.0
    %999 = vmatmul.mubr.f32.gmra.mrb[0].mxu0 %v932
    %v1000 = vpop.f32.mrb[0].mxu0
    %v1001 = vadd.f32 0.0, %v1000
    %v1002 = vpop.f32.mrb[0].mxu0
    %1003 = vdwg.mxu0
    %v1004 = vadd.f32 %v928, %v1001
    %v1005 = vxor.u32 %v1004, 2147483648
    %v1006 = vmul.f32 %v1005, 1.442695
    %v1007 = vpow.pop %v1006
    %v1008 = vadd.f32 %v1007, 1.0
    %v1009 = vrcp.pop %v1008
    %v1010 = vmul.f32 1.0, %v1009
    %1012 = vrot.lane.b32.xlu0 %v1004, 32
    %v1013 = vpop.permute.xlu0 %1012
    %v1015 = vmul.f32 %v1010, %v1013
    %1017 = vrot.lane.b32.xlu0 %v1015, 64
    %v1018 = vpop.permute.xlu0 %1017
    %v1020 = vadd.f32 %v1004, %v1018
    %v1021 = vtanh.pop %v1020
    %v1022 = vsub.f32 1.0, %v1010
    %1024 = vrot.lane.b32.xlu0 %v1021, 96
    %v1025 = vpop.permute.xlu0 %1024
    %v1027 = vmul.f32 %v1022, %v1025
    %v1028 = vmul.f32 %v1010, %v923
    %v1029 = vadd.f32 %v1027, %v1028
    %v1030 = vld [vmem:[#allocation10] sm:$0xff]
    %v1031 = vld [vmem:[#allocation10 + $0x8] sm:$0xff]
    %v1032 = vld [vmem:[#allocation10 + $0x10] sm:$0xff]
    %v1033 = vld [vmem:[#allocation10 + $0x18] sm:$0xff]
    %v1034 = vld [vmem:[#allocation10 + $0x20] sm:$0xff]
    %v1035 = vld [vmem:[#allocation10 + $0x28] sm:$0xff]
    %v1036 = vld [vmem:[#allocation10 + $0x30] sm:$0xff]
    %v1037 = vld [vmem:[#allocation10 + $0x38] sm:$0xff]
    %v1038 = vld [vmem:[%s6] sm:$0x1]
    %v1040 = vlaneseq
    %v1041 = vshrl.u32 %v1040, 7
    %v1042 = vsub.s32 0, %v1041
    %v1043 = vrot.slane %v1038, %v1042
    %1046 = vrot.lane.b32.xlu0 %v1029, 96
    %v1047 = vpop.permute.xlu0 %1046
    %v1048 = vsel %vm401, %v1047, 0
    %1050 = vmatprep.subr.mxu0 %v1031
    %1051 = vmatpush1.msra.mxu0 %v1030
    %1052 = vmatprep.subr.mxu0 %v1033
    %1053 = vmatpush1.msra.mxu0 %v1032
    %1054 = vmatprep.subr.mxu0 %v1035
    %1055 = vmatpush1.msra.mxu0 %v1034
    %1056 = vmatprep.subr.mxu0 %v1037
    %1057 = vmatpush1.msra.mxu0 %v1036
    %1058 = vmatprep.subr.mxu0 0.0
    %1059 = vmatpush1.msra.mxu0 0.0
    %1060 = vmatprep.subr.mxu0 0.0
    %1061 = vmatpush1.msra.mxu0 0.0
    %1062 = vmatprep.subr.mxu0 0.0
    %1063 = vmatpush1.msra.mxu0 0.0
    %1064 = vmatprep.subr.mxu0 0.0
    %1065 = vmatpush1.msra.mxu0 0.0
    %1066 = vmatprep.subr.mxu0 0.0
    %1067 = vmatpush1.msra.mxu0 0.0
    %1068 = vmatprep.subr.mxu0 0.0
    %1069 = vmatpush1.msra.mxu0 0.0
    %1070 = vmatprep.subr.mxu0 0.0
    %1071 = vmatpush1.msra.mxu0 0.0
    %1072 = vmatprep.subr.mxu0 0.0
    %1073 = vmatpush1.msra.mxu0 0.0
    %1074 = vmatprep.subr.mxu0 0.0
    %1075 = vmatpush1.msra.mxu0 0.0
    %1076 = vmatprep.subr.mxu0 0.0
    %1077 = vmatpush1.msra.mxu0 0.0
    %1078 = vmatprep.subr.mxu0 0.0
    %1079 = vmatpush1.msra.mxu0 0.0
    %1080 = vmatprep.subr.mxu0 0.0
    %1081 = vmatpush1.msra.mxu0 0.0
    %1082 = vmatprep.subr.mxu0 0.0
    %1083 = vmatpush1.msra.mxu0 0.0
    %1084 = vmatprep.subr.mxu0 0.0
    %1085 = vmatpush1.msra.mxu0 0.0
    %1086 = vmatprep.subr.mxu0 0.0
    %1087 = vmatpush1.msra.mxu0 0.0
    %1088 = vmatprep.subr.mxu0 0.0
    %1089 = vmatpush1.msra.mxu0 0.0
    %1090 = vmatprep.subr.mxu0 0.0
    %1091 = vmatpush1.msra.mxu0 0.0
    %1092 = vmatprep.subr.mxu0 0.0
    %1093 = vmatpush1.msra.mxu0 0.0
    %1094 = vmatprep.subr.mxu0 0.0
    %1095 = vmatpush1.msra.mxu0 0.0
    %1096 = vmatprep.subr.mxu0 0.0
    %1097 = vmatpush1.msra.mxu0 0.0
    %1098 = vmatprep.subr.mxu0 0.0
    %1099 = vmatpush1.msra.mxu0 0.0
    %1100 = vmatprep.subr.mxu0 0.0
    %1101 = vmatpush1.msra.mxu0 0.0
    %1102 = vmatprep.subr.mxu0 0.0
    %1103 = vmatpush1.msra.mxu0 0.0
    %1104 = vmatprep.subr.mxu0 0.0
    %1105 = vmatpush1.msra.mxu0 0.0
    %1106 = vmatprep.subr.mxu0 0.0
    %1107 = vmatpush1.msra.mxu0 0.0
    %1108 = vmatprep.subr.mxu0 0.0
    %1109 = vmatpush1.msra.mxu0 0.0
    %1110 = vmatprep.subr.mxu0 0.0
    %1111 = vmatpush1.msra.mxu0 0.0
    %1112 = vmatprep.subr.mxu0 0.0
    %1113 = vmatpush1.msra.mxu0 0.0
    %1114 = vmatprep.mubr.f32.mxu0 0.0
    %1115 = vmatmul.mubr.f32.gmra.mrb[0].mxu0 %v1048
    %v1116 = vpop.f32.mrb[0].mxu0
    %v1117 = vadd.f32 0.0, %v1116
    %v1118 = vpop.f32.mrb[0].mxu0
    %1119 = vdwg.mxu0
    %v1120 = vadd.f32 %v358, %v1117
    %v1121 = vxor.u32 %v1120, 2147483648
    %v1122 = vmul.f32 %v1121, 1.442695
    %v1123 = vpow.pop %v1122
    %v1124 = vadd.f32 %v1123, 1.0
    %v1125 = vrcp.pop %v1124
    %v1126 = vmul.f32 1.0, %v1125
    %1128 = vrot.lane.b32.xlu0 %v1120, 32
    %v1129 = vpop.permute.xlu0 %1128
    %v1131 = vmul.f32 %v1126, %v1129
    %1133 = vrot.lane.b32.xlu0 %v1131, 64
    %v1134 = vpop.permute.xlu0 %1133
    %v1136 = vadd.f32 %v1120, %v1134
    %v1137 = vtanh.pop %v1136
    %v1138 = vsub.f32 1.0, %v1126
    %1140 = vrot.lane.b32.xlu0 %v1137, 96
    %v1141 = vpop.permute.xlu0 %1140
    %v1143 = vmul.f32 %v1138, %v1141
    %v1144 = vmul.f32 %v1126, %v1029
    %v1145 = vadd.f32 %v1143, %v1144
    %1147 = vrot.lane.b32.xlu0 %v1145, 96
    %v1148 = vpop.permute.xlu0 %1147
    %v1149 = vsel %vm401, %v1148, 0
    %1151 = vmatprep.subr.mxu0 %v1031
    %1152 = vmatpush1.msra.mxu0 %v1030
    %1153 = vmatprep.subr.mxu0 %v1033
    %1154 = vmatpush1.msra.mxu0 %v1032
    %1155 = vmatprep.subr.mxu0 %v1035
    %1156 = vmatpush1.msra.mxu0 %v1034
    %1157 = vmatprep.subr.mxu0 %v1037
    %1158 = vmatpush1.msra.mxu0 %v1036
    %1159 = vmatprep.subr.mxu0 0.0
    %1160 = vmatpush1.msra.mxu0 0.0
    %1161 = vmatprep.subr.mxu0 0.0
    %1162 = vmatpush1.msra.mxu0 0.0
    %1163 = vmatprep.subr.mxu0 0.0
    %1164 = vmatpush1.msra.mxu0 0.0
    %1165 = vmatprep.subr.mxu0 0.0
    %1166 = vmatpush1.msra.mxu0 0.0
    %1167 = vmatprep.subr.mxu0 0.0
    %1168 = vmatpush1.msra.mxu0 0.0
    %1169 = vmatprep.subr.mxu0 0.0
    %1170 = vmatpush1.msra.mxu0 0.0
    %1171 = vmatprep.subr.mxu0 0.0
    %1172 = vmatpush1.msra.mxu0 0.0
    %1173 = vmatprep.subr.mxu0 0.0
    %1174 = vmatpush1.msra.mxu0 0.0
    %1175 = vmatprep.subr.mxu0 0.0
    %1176 = vmatpush1.msra.mxu0 0.0
    %1177 = vmatprep.subr.mxu0 0.0
    %1178 = vmatpush1.msra.mxu0 0.0
    %1179 = vmatprep.subr.mxu0 0.0
    %1180 = vmatpush1.msra.mxu0 0.0
    %1181 = vmatprep.subr.mxu0 0.0
    %1182 = vmatpush1.msra.mxu0 0.0
    %1183 = vmatprep.subr.mxu0 0.0
    %1184 = vmatpush1.msra.mxu0 0.0
    %1185 = vmatprep.subr.mxu0 0.0
    %1186 = vmatpush1.msra.mxu0 0.0
    %1187 = vmatprep.subr.mxu0 0.0
    %1188 = vmatpush1.msra.mxu0 0.0
    %1189 = vmatprep.subr.mxu0 0.0
    %1190 = vmatpush1.msra.mxu0 0.0
    %1191 = vmatprep.subr.mxu0 0.0
    %1192 = vmatpush1.msra.mxu0 0.0
    %1193 = vmatprep.subr.mxu0 0.0
    %1194 = vmatpush1.msra.mxu0 0.0
    %1195 = vmatprep.subr.mxu0 0.0
    %1196 = vmatpush1.msra.mxu0 0.0
    %1197 = vmatprep.subr.mxu0 0.0
    %1198 = vmatpush1.msra.mxu0 0.0
    %1199 = vmatprep.subr.mxu0 0.0
    %1200 = vmatpush1.msra.mxu0 0.0
    %1201 = vmatprep.subr.mxu0 0.0
    %1202 = vmatpush1.msra.mxu0 0.0
    %1203 = vmatprep.subr.mxu0 0.0
    %1204 = vmatpush1.msra.mxu0 0.0
    %1205 = vmatprep.subr.mxu0 0.0
    %1206 = vmatpush1.msra.mxu0 0.0
    %1207 = vmatprep.subr.mxu0 0.0
    %1208 = vmatpush1.msra.mxu0 0.0
    %1209 = vmatprep.subr.mxu0 0.0
    %1210 = vmatpush1.msra.mxu0 0.0
    %1211 = vmatprep.subr.mxu0 0.0
    %1212 = vmatpush1.msra.mxu0 0.0
    %1213 = vmatprep.subr.mxu0 0.0
    %1214 = vmatpush1.msra.mxu0 0.0
    %1215 = vmatprep.mubr.f32.mxu0 0.0
    %1216 = vmatmul.mubr.f32.gmra.mrb[0].mxu0 %v1149
    %v1217 = vpop.f32.mrb[0].mxu0
    %v1218 = vadd.f32 0.0, %v1217
    %v1219 = vpop.f32.mrb[0].mxu0
    %v1220 = vadd.f32 0.0, %v1219
    %1221 = vdwg.mxu0
    %v1222 = vadd.f32 %v358, %v1220
    %v1223 = vadd.f32 %v1222, %v1043
    %v1224 = vadd.f32 %v1223, %v1218
    %v1225 = vxor.u32 %v1224, 2147483648
    %v1226 = vmul.f32 %v1225, 1.442695
    %v1227 = vpow.pop %v1226
    %v1228 = vadd.f32 %v1227, 1.0
    %v1229 = vrcp.pop %v1228
    %v1230 = vmul.f32 1.0, %v1229
    %1232 = vrot.lane.b32.xlu0 %v1224, 32
    %v1233 = vpop.permute.xlu0 %1232
    %v1235 = vmul.f32 %v1230, %v1233
    %1237 = vrot.lane.b32.xlu0 %v1235, 64
    %v1238 = vpop.permute.xlu0 %1237
    %v1240 = vadd.f32 %v1224, %v1238
    %v1241 = vtanh.pop %v1240
    %v1242 = vsub.f32 1.0, %v1230
    %1244 = vrot.lane.b32.xlu0 %v1241, 96
    %v1245 = vpop.permute.xlu0 %1244
    %v1247 = vmul.f32 %v1242, %v1245
    %v1248 = vmul.f32 %v1230, %v1145
    %v1249 = vadd.f32 %v1247, %v1248
    %1251 = vrot.lane.b32.xlu0 %v1249, 96
    %v1252 = vpop.permute.xlu0 %1251
    %v1253 = vsel %vm401, %v1252, 0
    %1255 = vmatprep.subr.mxu0 %v1031
    %1256 = vmatpush1.msra.mxu0 %v1030
    %1257 = vmatprep.subr.mxu0 %v1033
    %1258 = vmatpush1.msra.mxu0 %v1032
    %1259 = vmatprep.subr.mxu0 %v1035
    %1260 = vmatpush1.msra.mxu0 %v1034
    %1261 = vmatprep.subr.mxu0 %v1037
    %1262 = vmatpush1.msra.mxu0 %v1036
    %1263 = vmatprep.subr.mxu0 0.0
    %1264 = vmatpush1.msra.mxu0 0.0
    %1265 = vmatprep.subr.mxu0 0.0
    %1266 = vmatpush1.msra.mxu0 0.0
    %1267 = vmatprep.subr.mxu0 0.0
    %1268 = vmatpush1.msra.mxu0 0.0
    %1269 = vmatprep.subr.mxu0 0.0
    %1270 = vmatpush1.msra.mxu0 0.0
    %1271 = vmatprep.subr.mxu0 0.0
    %1272 = vmatpush1.msra.mxu0 0.0
    %1273 = vmatprep.subr.mxu0 0.0
    %1274 = vmatpush1.msra.mxu0 0.0
    %1275 = vmatprep.subr.mxu0 0.0
    %1276 = vmatpush1.msra.mxu0 0.0
    %1277 = vmatprep.subr.mxu0 0.0
    %1278 = vmatpush1.msra.mxu0 0.0
    %1279 = vmatprep.subr.mxu0 0.0
    %1280 = vmatpush1.msra.mxu0 0.0
    %1281 = vmatprep.subr.mxu0 0.0
    %1282 = vmatpush1.msra.mxu0 0.0
    %1283 = vmatprep.subr.mxu0 0.0
    %1284 = vmatpush1.msra.mxu0 0.0
    %1285 = vmatprep.subr.mxu0 0.0
    %1286 = vmatpush1.msra.mxu0 0.0
    %1287 = vmatprep.subr.mxu0 0.0
    %1288 = vmatpush1.msra.mxu0 0.0
    %1289 = vmatprep.subr.mxu0 0.0
    %1290 = vmatpush1.msra.mxu0 0.0
    %1291 = vmatprep.subr.mxu0 0.0
    %1292 = vmatpush1.msra.mxu0 0.0
    %1293 = vmatprep.subr.mxu0 0.0
    %1294 = vmatpush1.msra.mxu0 0.0
    %1295 = vmatprep.subr.mxu0 0.0
    %1296 = vmatpush1.msra.mxu0 0.0
    %1297 = vmatprep.subr.mxu0 0.0
    %1298 = vmatpush1.msra.mxu0 0.0
    %1299 = vmatprep.subr.mxu0 0.0
    %1300 = vmatpush1.msra.mxu0 0.0
    %1301 = vmatprep.subr.mxu0 0.0
    %1302 = vmatpush1.msra.mxu0 0.0
    %1303 = vmatprep.subr.mxu0 0.0
    %1304 = vmatpush1.msra.mxu0 0.0
    %1305 = vmatprep.subr.mxu0 0.0
    %1306 = vmatpush1.msra.mxu0 0.0
    %1307 = vmatprep.subr.mxu0 0.0
    %1308 = vmatpush1.msra.mxu0 0.0
    %1309 = vmatprep.subr.mxu0 0.0
    %1310 = vmatpush1.msra.mxu0 0.0
    %1311 = vmatprep.subr.mxu0 0.0
    %1312 = vmatpush1.msra.mxu0 0.0
    %1313 = vmatprep.subr.mxu0 0.0
    %1314 = vmatpush1.msra.mxu0 0.0
    %1315 = vmatprep.subr.mxu0 0.0
    %1316 = vmatpush1.msra.mxu0 0.0
    %1317 = vmatprep.subr.mxu0 0.0
    %1318 = vmatpush1.msra.mxu0 0.0
    %1319 = vmatprep.mubr.f32.mxu0 0.0
    %1320 = vmatmul.mubr.f32.gmra.mrb[0].mxu0 %v1253
    %v1321 = vpop.f32.mrb[0].mxu0
    %v1322 = vadd.f32 0.0, %v1321
    %v1323 = vpop.f32.mrb[0].mxu0
    %v1324 = vadd.f32 0.0, %v1323
    %1325 = vdwg.mxu0
    %v1326 = vadd.f32 %v1223, %v1324
    %v1327 = vadd.f32 %v1326, %v1043
    %v1328 = vadd.f32 %v1327, %v1322
    %v1329 = vxor.u32 %v1328, 2147483648
    %v1330 = vmul.f32 %v1329, 1.442695
    %v1331 = vpow.pop %v1330
    %v1332 = vadd.f32 %v1331, 1.0
    %v1333 = vrcp.pop %v1332
    %v1334 = vmul.f32 1.0, %v1333
    %1336 = vrot.lane.b32.xlu0 %v1328, 32
    %v1337 = vpop.permute.xlu0 %1336
    %v1339 = vmul.f32 %v1334, %v1337
    %1341 = vrot.lane.b32.xlu0 %v1339, 64
    %v1342 = vpop.permute.xlu0 %1341
    %v1344 = vadd.f32 %v1328, %v1342
    %v1345 = vtanh.pop %v1344
    %v1346 = vsub.f32 1.0, %v1334
    %1348 = vrot.lane.b32.xlu0 %v1345, 96
    %v1349 = vpop.permute.xlu0 %1348
    %v1351 = vmul.f32 %v1346, %v1349
    %v1352 = vmul.f32 %v1334, %v1249
    %v1353 = vadd.f32 %v1351, %v1352
    %1355 = vrot.lane.b32.xlu0 %v1353, 96
    %v1356 = vpop.permute.xlu0 %1355
    %v1357 = vsel %vm401, %v1356, 0
    %1359 = vmatprep.subr.mxu0 %v1031
    %1360 = vmatpush1.msra.mxu0 %v1030
    %1361 = vmatprep.subr.mxu0 %v1033
    %1362 = vmatpush1.msra.mxu0 %v1032
    %1363 = vmatprep.subr.mxu0 %v1035
    %1364 = vmatpush1.msra.mxu0 %v1034
    %1365 = vmatprep.subr.mxu0 %v1037
    %1366 = vmatpush1.msra.mxu0 %v1036
    %1367 = vmatprep.subr.mxu0 0.0
    %1368 = vmatpush1.msra.mxu0 0.0
    %1369 = vmatprep.subr.mxu0 0.0
    %1370 = vmatpush1.msra.mxu0 0.0
    %1371 = vmatprep.subr.mxu0 0.0
    %1372 = vmatpush1.msra.mxu0 0.0
    %1373 = vmatprep.subr.mxu0 0.0
    %1374 = vmatpush1.msra.mxu0 0.0
    %1375 = vmatprep.subr.mxu0 0.0
    %1376 = vmatpush1.msra.mxu0 0.0
    %1377 = vmatprep.subr.mxu0 0.0
    %1378 = vmatpush1.msra.mxu0 0.0
    %1379 = vmatprep.subr.mxu0 0.0
    %1380 = vmatpush1.msra.mxu0 0.0
    %1381 = vmatprep.subr.mxu0 0.0
    %1382 = vmatpush1.msra.mxu0 0.0
    %1383 = vmatprep.subr.mxu0 0.0
    %1384 = vmatpush1.msra.mxu0 0.0
    %1385 = vmatprep.subr.mxu0 0.0
    %1386 = vmatpush1.msra.mxu0 0.0
    %1387 = vmatprep.subr.mxu0 0.0
    %1388 = vmatpush1.msra.mxu0 0.0
    %1389 = vmatprep.subr.mxu0 0.0
    %1390 = vmatpush1.msra.mxu0 0.0
    %1391 = vmatprep.subr.mxu0 0.0
    %1392 = vmatpush1.msra.mxu0 0.0
    %1393 = vmatprep.subr.mxu0 0.0
    %1394 = vmatpush1.msra.mxu0 0.0
    %1395 = vmatprep.subr.mxu0 0.0
    %1396 = vmatpush1.msra.mxu0 0.0
    %1397 = vmatprep.subr.mxu0 0.0
    %1398 = vmatpush1.msra.mxu0 0.0
    %1399 = vmatprep.subr.mxu0 0.0
    %1400 = vmatpush1.msra.mxu0 0.0
    %1401 = vmatprep.subr.mxu0 0.0
    %1402 = vmatpush1.msra.mxu0 0.0
    %1403 = vmatprep.subr.mxu0 0.0
    %1404 = vmatpush1.msra.mxu0 0.0
    %1405 = vmatprep.subr.mxu0 0.0
    %1406 = vmatpush1.msra.mxu0 0.0
    %1407 = vmatprep.subr.mxu0 0.0
    %1408 = vmatpush1.msra.mxu0 0.0
    %1409 = vmatprep.subr.mxu0 0.0
    %1410 = vmatpush1.msra.mxu0 0.0
    %1411 = vmatprep.subr.mxu0 0.0
    %1412 = vmatpush1.msra.mxu0 0.0
    %1413 = vmatprep.subr.mxu0 0.0
    %1414 = vmatpush1.msra.mxu0 0.0
    %1415 = vmatprep.subr.mxu0 0.0
    %1416 = vmatpush1.msra.mxu0 0.0
    %1417 = vmatprep.subr.mxu0 0.0
    %1418 = vmatpush1.msra.mxu0 0.0
    %1419 = vmatprep.subr.mxu0 0.0
    %1420 = vmatpush1.msra.mxu0 0.0
    %1421 = vmatprep.subr.mxu0 0.0
    %1422 = vmatpush1.msra.mxu0 0.0
    %1423 = vmatprep.mubr.f32.mxu0 0.0
    %1424 = vmatmul.mubr.f32.gmra.mrb[0].mxu0 %v1357
    %v1425 = vpop.f32.mrb[0].mxu0
    %v1426 = vadd.f32 0.0, %v1425
    %v1427 = vpop.f32.mrb[0].mxu0
    %v1428 = vadd.f32 0.0, %v1427
    %1429 = vdwg.mxu0
    %v1430 = vadd.f32 %v1327, %v1428
    %v1431 = vadd.f32 %v1430, %v1043
    %v1432 = vadd.f32 %v1431, %v1426
    %v1433 = vxor.u32 %v1432, 2147483648
    %v1434 = vmul.f32 %v1433, 1.442695
    %v1435 = vpow.pop %v1434
    %v1436 = vadd.f32 %v1435, 1.0
    %v1437 = vrcp.pop %v1436
    %v1438 = vmul.f32 1.0, %v1437
    %1440 = vrot.lane.b32.xlu0 %v1432, 32
    %v1441 = vpop.permute.xlu0 %1440
    %v1443 = vmul.f32 %v1438, %v1441
    %1445 = vrot.lane.b32.xlu0 %v1443, 64
    %v1446 = vpop.permute.xlu0 %1445
    %v1448 = vadd.f32 %v1432, %v1446
    %v1449 = vtanh.pop %v1448
    %v1450 = vsub.f32 1.0, %v1438
    %1452 = vrot.lane.b32.xlu0 %v1449, 96
    %v1453 = vpop.permute.xlu0 %1452
    %v1455 = vmul.f32 %v1450, %v1453
    %v1456 = vmul.f32 %v1438, %v1353
    %v1457 = vadd.f32 %v1455, %v1456
    %1459 = vrot.lane.b32.xlu0 %v1457, 96
    %v1460 = vpop.permute.xlu0 %1459
    %v1461 = vsel %vm401, %v1460, 0
    %1463 = vmatprep.subr.mxu0 %v1031
    %1464 = vmatpush1.msra.mxu0 %v1030
    %1465 = vmatprep.subr.mxu0 %v1033
    %1466 = vmatpush1.msra.mxu0 %v1032
    %1467 = vmatprep.subr.mxu0 %v1035
    %1468 = vmatpush1.msra.mxu0 %v1034
    %1469 = vmatprep.subr.mxu0 %v1037
    %1470 = vmatpush1.msra.mxu0 %v1036
    %1471 = vmatprep.subr.mxu0 0.0
    %1472 = vmatpush1.msra.mxu0 0.0
    %1473 = vmatprep.subr.mxu0 0.0
    %1474 = vmatpush1.msra.mxu0 0.0
    %1475 = vmatprep.subr.mxu0 0.0
    %1476 = vmatpush1.msra.mxu0 0.0
    %1477 = vmatprep.subr.mxu0 0.0
    %1478 = vmatpush1.msra.mxu0 0.0
    %1479 = vmatprep.subr.mxu0 0.0
    %1480 = vmatpush1.msra.mxu0 0.0
    %1481 = vmatprep.subr.mxu0 0.0
    %1482 = vmatpush1.msra.mxu0 0.0
    %1483 = vmatprep.subr.mxu0 0.0
    %1484 = vmatpush1.msra.mxu0 0.0
    %1485 = vmatprep.subr.mxu0 0.0
    %1486 = vmatpush1.msra.mxu0 0.0
    %1487 = vmatprep.subr.mxu0 0.0
    %1488 = vmatpush1.msra.mxu0 0.0
    %1489 = vmatprep.subr.mxu0 0.0
    %1490 = vmatpush1.msra.mxu0 0.0
    %1491 = vmatprep.subr.mxu0 0.0
    %1492 = vmatpush1.msra.mxu0 0.0
    %1493 = vmatprep.subr.mxu0 0.0
    %1494 = vmatpush1.msra.mxu0 0.0
    %1495 = vmatprep.subr.mxu0 0.0
    %1496 = vmatpush1.msra.mxu0 0.0
    %1497 = vmatprep.subr.mxu0 0.0
    %1498 = vmatpush1.msra.mxu0 0.0
    %1499 = vmatprep.subr.mxu0 0.0
    %1500 = vmatpush1.msra.mxu0 0.0
    %1501 = vmatprep.subr.mxu0 0.0
    %1502 = vmatpush1.msra.mxu0 0.0
    %1503 = vmatprep.subr.mxu0 0.0
    %1504 = vmatpush1.msra.mxu0 0.0
    %1505 = vmatprep.subr.mxu0 0.0
    %1506 = vmatpush1.msra.mxu0 0.0
    %1507 = vmatprep.subr.mxu0 0.0
    %1508 = vmatpush1.msra.mxu0 0.0
    %1509 = vmatprep.subr.mxu0 0.0
    %1510 = vmatpush1.msra.mxu0 0.0
    %1511 = vmatprep.subr.mxu0 0.0
    %1512 = vmatpush1.msra.mxu0 0.0
    %1513 = vmatprep.subr.mxu0 0.0
    %1514 = vmatpush1.msra.mxu0 0.0
    %1515 = vmatprep.subr.mxu0 0.0
    %1516 = vmatpush1.msra.mxu0 0.0
    %1517 = vmatprep.subr.mxu0 0.0
    %1518 = vmatpush1.msra.mxu0 0.0
    %1519 = vmatprep.subr.mxu0 0.0
    %1520 = vmatpush1.msra.mxu0 0.0
    %1521 = vmatprep.subr.mxu0 0.0
    %1522 = vmatpush1.msra.mxu0 0.0
    %1523 = vmatprep.subr.mxu0 0.0
    %1524 = vmatpush1.msra.mxu0 0.0
    %1525 = vmatprep.subr.mxu0 0.0
    %1526 = vmatpush1.msra.mxu0 0.0
    %1527 = vmatprep.mubr.f32.mxu0 0.0
    %1528 = vmatmul.mubr.f32.gmra.mrb[0].mxu0 %v1461
    %v1529 = vpop.f32.mrb[0].mxu0
    %v1530 = vadd.f32 0.0, %v1529
    %v1531 = vpop.f32.mrb[0].mxu0
    %v1532 = vadd.f32 0.0, %v1531
    %1533 = vdwg.mxu0
    %v1534 = vadd.f32 %v1431, %v1532
    %v1535 = vadd.f32 %v1534, %v1043
    %v1536 = vadd.f32 %v1535, %v1530
    %v1537 = vxor.u32 %v1536, 2147483648
    %v1538 = vmul.f32 %v1537, 1.442695
    %v1539 = vpow.pop %v1538
    %v1540 = vadd.f32 %v1539, 1.0
    %v1541 = vrcp.pop %v1540
    %v1542 = vmul.f32 1.0, %v1541
    %1544 = vrot.lane.b32.xlu0 %v1536, 32
    %v1545 = vpop.permute.xlu0 %1544
    %v1547 = vmul.f32 %v1542, %v1545
    %1549 = vrot.lane.b32.xlu0 %v1547, 64
    %v1550 = vpop.permute.xlu0 %1549
    %v1552 = vadd.f32 %v1536, %v1550
    %v1553 = vtanh.pop %v1552
    %v1554 = vsub.f32 1.0, %v1542
    %1556 = vrot.lane.b32.xlu0 %v1553, 96
    %v1557 = vpop.permute.xlu0 %1556
    %v1559 = vmul.f32 %v1554, %v1557
    %v1560 = vmul.f32 %v1542, %v1457
    %v1561 = vadd.f32 %v1559, %v1560
    %1563 = vrot.lane.b32.xlu0 %v1561, 96
    %v1564 = vpop.permute.xlu0 %1563
    %v1565 = vsel %vm401, %v1564, 0
    %1567 = vmatprep.subr.mxu0 %v1031
    %1568 = vmatpush1.msra.mxu0 %v1030
    %1569 = vmatprep.subr.mxu0 %v1033
    %1570 = vmatpush1.msra.mxu0 %v1032
    %1571 = vmatprep.subr.mxu0 %v1035
    %1572 = vmatpush1.msra.mxu0 %v1034
    %1573 = vmatprep.subr.mxu0 %v1037
    %1574 = vmatpush1.msra.mxu0 %v1036
    %1575 = vmatprep.subr.mxu0 0.0
    %1576 = vmatpush1.msra.mxu0 0.0
    %1577 = vmatprep.subr.mxu0 0.0
    %1578 = vmatpush1.msra.mxu0 0.0
    %1579 = vmatprep.subr.mxu0 0.0
    %1580 = vmatpush1.msra.mxu0 0.0
    %1581 = vmatprep.subr.mxu0 0.0
    %1582 = vmatpush1.msra.mxu0 0.0
    %1583 = vmatprep.subr.mxu0 0.0
    %1584 = vmatpush1.msra.mxu0 0.0
    %1585 = vmatprep.subr.mxu0 0.0
    %1586 = vmatpush1.msra.mxu0 0.0
    %1587 = vmatprep.subr.mxu0 0.0
    %1588 = vmatpush1.msra.mxu0 0.0
    %1589 = vmatprep.subr.mxu0 0.0
    %1590 = vmatpush1.msra.mxu0 0.0
    %1591 = vmatprep.subr.mxu0 0.0
    %1592 = vmatpush1.msra.mxu0 0.0
    %1593 = vmatprep.subr.mxu0 0.0
    %1594 = vmatpush1.msra.mxu0 0.0
    %1595 = vmatprep.subr.mxu0 0.0
    %1596 = vmatpush1.msra.mxu0 0.0
    %1597 = vmatprep.subr.mxu0 0.0
    %1598 = vmatpush1.msra.mxu0 0.0
    %1599 = vmatprep.subr.mxu0 0.0
    %1600 = vmatpush1.msra.mxu0 0.0
    %1601 = vmatprep.subr.mxu0 0.0
    %1602 = vmatpush1.msra.mxu0 0.0
    %1603 = vmatprep.subr.mxu0 0.0
    %1604 = vmatpush1.msra.mxu0 0.0
    %1605 = vmatprep.subr.mxu0 0.0
    %1606 = vmatpush1.msra.mxu0 0.0
    %1607 = vmatprep.subr.mxu0 0.0
    %1608 = vmatpush1.msra.mxu0 0.0
    %1609 = vmatprep.subr.mxu0 0.0
    %1610 = vmatpush1.msra.mxu0 0.0
    %1611 = vmatprep.subr.mxu0 0.0
    %1612 = vmatpush1.msra.mxu0 0.0
    %1613 = vmatprep.subr.mxu0 0.0
    %1614 = vmatpush1.msra.mxu0 0.0
    %1615 = vmatprep.subr.mxu0 0.0
    %1616 = vmatpush1.msra.mxu0 0.0
    %1617 = vmatprep.subr.mxu0 0.0
    %1618 = vmatpush1.msra.mxu0 0.0
    %1619 = vmatprep.subr.mxu0 0.0
    %1620 = vmatpush1.msra.mxu0 0.0
    %1621 = vmatprep.subr.mxu0 0.0
    %1622 = vmatpush1.msra.mxu0 0.0
    %1623 = vmatprep.subr.mxu0 0.0
    %1624 = vmatpush1.msra.mxu0 0.0
    %1625 = vmatprep.subr.mxu0 0.0
    %1626 = vmatpush1.msra.mxu0 0.0
    %1627 = vmatprep.subr.mxu0 0.0
    %1628 = vmatpush1.msra.mxu0 0.0
    %1629 = vmatprep.subr.mxu0 0.0
    %1630 = vmatpush1.msra.mxu0 0.0
    %1631 = vmatprep.mubr.f32.mxu0 0.0
    %1632 = vmatmul.mubr.f32.gmra.mrb[0].mxu0 %v1565
    %v1633 = vpop.f32.mrb[0].mxu0
    %v1634 = vadd.f32 0.0, %v1633
    %v1635 = vpop.f32.mrb[0].mxu0
    %v1636 = vadd.f32 0.0, %v1635
    %1637 = vdwg.mxu0
    %v1638 = vadd.f32 %v1535, %v1636
    %v1639 = vadd.f32 %v1638, %v1043
    %v1640 = vadd.f32 %v1639, %v1634
    %v1641 = vxor.u32 %v1640, 2147483648
    %v1642 = vmul.f32 %v1641, 1.442695
    %v1643 = vpow.pop %v1642
    %v1644 = vadd.f32 %v1643, 1.0
    %v1645 = vrcp.pop %v1644
    %v1646 = vmul.f32 1.0, %v1645
    %1648 = vrot.lane.b32.xlu0 %v1640, 32
    %v1649 = vpop.permute.xlu0 %1648
    %v1651 = vmul.f32 %v1646, %v1649
    %1653 = vrot.lane.b32.xlu0 %v1651, 64
    %v1654 = vpop.permute.xlu0 %1653
    %v1656 = vadd.f32 %v1640, %v1654
    %v1657 = vtanh.pop %v1656
    %v1658 = vsub.f32 1.0, %v1646
    %1660 = vrot.lane.b32.xlu0 %v1657, 96
    %v1661 = vpop.permute.xlu0 %1660
    %v1663 = vmul.f32 %v1658, %v1661
    %v1664 = vmul.f32 %v1646, %v1561
    %v1665 = vadd.f32 %v1663, %v1664
    %1667 = vrot.lane.b32.xlu0 %v1665, 96
    %v1668 = vpop.permute.xlu0 %1667
    %v1669 = vsel %vm401, %v1668, 0
    %1671 = vmatprep.subr.mxu0 %v1031
    %1672 = vmatpush1.msra.mxu0 %v1030
    %1673 = vmatprep.subr.mxu0 %v1033
    %1674 = vmatpush1.msra.mxu0 %v1032
    %1675 = vmatprep.subr.mxu0 %v1035
    %1676 = vmatpush1.msra.mxu0 %v1034
    %1677 = vmatprep.subr.mxu0 %v1037
    %1678 = vmatpush1.msra.mxu0 %v1036
    %1679 = vmatprep.subr.mxu0 0.0
    %1680 = vmatpush1.msra.mxu0 0.0
    %1681 = vmatprep.subr.mxu0 0.0
    %1682 = vmatpush1.msra.mxu0 0.0
    %1683 = vmatprep.subr.mxu0 0.0
    %1684 = vmatpush1.msra.mxu0 0.0
    %1685 = vmatprep.subr.mxu0 0.0
    %1686 = vmatpush1.msra.mxu0 0.0
    %1687 = vmatprep.subr.mxu0 0.0
    %1688 = vmatpush1.msra.mxu0 0.0
    %1689 = vmatprep.subr.mxu0 0.0
    %1690 = vmatpush1.msra.mxu0 0.0
    %1691 = vmatprep.subr.mxu0 0.0
    %1692 = vmatpush1.msra.mxu0 0.0
    %1693 = vmatprep.subr.mxu0 0.0
    %1694 = vmatpush1.msra.mxu0 0.0
    %1695 = vmatprep.subr.mxu0 0.0
    %1696 = vmatpush1.msra.mxu0 0.0
    %1697 = vmatprep.subr.mxu0 0.0
    %1698 = vmatpush1.msra.mxu0 0.0
    %1699 = vmatprep.subr.mxu0 0.0
    %1700 = vmatpush1.msra.mxu0 0.0
    %1701 = vmatprep.subr.mxu0 0.0
    %1702 = vmatpush1.msra.mxu0 0.0
    %1703 = vmatprep.subr.mxu0 0.0
    %1704 = vmatpush1.msra.mxu0 0.0
    %1705 = vmatprep.subr.mxu0 0.0
    %1706 = vmatpush1.msra.mxu0 0.0
    %1707 = vmatprep.subr.mxu0 0.0
    %1708 = vmatpush1.msra.mxu0 0.0
    %1709 = vmatprep.subr.mxu0 0.0
    %1710 = vmatpush1.msra.mxu0 0.0
    %1711 = vmatprep.subr.mxu0 0.0
    %1712 = vmatpush1.msra.mxu0 0.0
    %1713 = vmatprep.subr.mxu0 0.0
    %1714 = vmatpush1.msra.mxu0 0.0
    %1715 = vmatprep.subr.mxu0 0.0
    %1716 = vmatpush1.msra.mxu0 0.0
    %1717 = vmatprep.subr.mxu0 0.0
    %1718 = vmatpush1.msra.mxu0 0.0
    %1719 = vmatprep.subr.mxu0 0.0
    %1720 = vmatpush1.msra.mxu0 0.0
    %1721 = vmatprep.subr.mxu0 0.0
    %1722 = vmatpush1.msra.mxu0 0.0
    %1723 = vmatprep.subr.mxu0 0.0
    %1724 = vmatpush1.msra.mxu0 0.0
    %1725 = vmatprep.subr.mxu0 0.0
    %1726 = vmatpush1.msra.mxu0 0.0
    %1727 = vmatprep.subr.mxu0 0.0
    %1728 = vmatpush1.msra.mxu0 0.0
    %1729 = vmatprep.subr.mxu0 0.0
    %1730 = vmatpush1.msra.mxu0 0.0
    %1731 = vmatprep.subr.mxu0 0.0
    %1732 = vmatpush1.msra.mxu0 0.0
    %1733 = vmatprep.subr.mxu0 0.0
    %1734 = vmatpush1.msra.mxu0 0.0
    %1735 = vmatprep.mubr.f32.mxu0 0.0
    %1736 = vmatmul.mubr.f32.gmra.mrb[0].mxu0 %v1669
    %v1737 = vpop.f32.mrb[0].mxu0
    %v1738 = vadd.f32 0.0, %v1737
    %v1739 = vpop.f32.mrb[0].mxu0
    %v1740 = vadd.f32 0.0, %v1739
    %1741 = vdwg.mxu0
    %v1742 = vadd.f32 %v1639, %v1740
    %v1743 = vadd.f32 %v1742, %v1043
    %v1744 = vadd.f32 %v1743, %v1738
    %v1745 = vxor.u32 %v1744, 2147483648
    %v1746 = vmul.f32 %v1745, 1.442695
    %v1747 = vpow.pop %v1746
    %v1748 = vadd.f32 %v1747, 1.0
    %v1749 = vrcp.pop %v1748
    %v1750 = vmul.f32 1.0, %v1749
    %1752 = vrot.lane.b32.xlu0 %v1744, 32
    %v1753 = vpop.permute.xlu0 %1752
    %v1755 = vmul.f32 %v1750, %v1753
    %1757 = vrot.lane.b32.xlu0 %v1755, 64
    %v1758 = vpop.permute.xlu0 %1757
    %v1760 = vadd.f32 %v1744, %v1758
    %v1761 = vtanh.pop %v1760
    %v1762 = vsub.f32 1.0, %v1750
    %1764 = vrot.lane.b32.xlu0 %v1761, 96
    %v1765 = vpop.permute.xlu0 %1764
    %v1767 = vmul.f32 %v1762, %v1765
    %v1768 = vmul.f32 %v1750, %v1665
    %v1769 = vadd.f32 %v1767, %v1768
    %1771 = vrot.lane.b32.xlu0 %v1769, 96
    %v1772 = vpop.permute.xlu0 %1771
    %v1773 = vsel %vm401, %v1772, 0
    %1775 = vmatprep.subr.mxu0 %v1031
    %1776 = vmatpush1.msra.mxu0 %v1030
    %1777 = vmatprep.subr.mxu0 %v1033
    %1778 = vmatpush1.msra.mxu0 %v1032
    %1779 = vmatprep.subr.mxu0 %v1035
    %1780 = vmatpush1.msra.mxu0 %v1034
    %1781 = vmatprep.subr.mxu0 %v1037
    %1782 = vmatpush1.msra.mxu0 %v1036
    %1783 = vmatprep.subr.mxu0 0.0
    %1784 = vmatpush1.msra.mxu0 0.0
    %1785 = vmatprep.subr.mxu0 0.0
    %1786 = vmatpush1.msra.mxu0 0.0
    %1787 = vmatprep.subr.mxu0 0.0
    %1788 = vmatpush1.msra.mxu0 0.0
    %1789 = vmatprep.subr.mxu0 0.0
    %1790 = vmatpush1.msra.mxu0 0.0
    %1791 = vmatprep.subr.mxu0 0.0
    %1792 = vmatpush1.msra.mxu0 0.0
    %1793 = vmatprep.subr.mxu0 0.0
    %1794 = vmatpush1.msra.mxu0 0.0
    %1795 = vmatprep.subr.mxu0 0.0
    %1796 = vmatpush1.msra.mxu0 0.0
    %1797 = vmatprep.subr.mxu0 0.0
    %1798 = vmatpush1.msra.mxu0 0.0
    %1799 = vmatprep.subr.mxu0 0.0
    %1800 = vmatpush1.msra.mxu0 0.0
    %1801 = vmatprep.subr.mxu0 0.0
    %1802 = vmatpush1.msra.mxu0 0.0
    %1803 = vmatprep.subr.mxu0 0.0
    %1804 = vmatpush1.msra.mxu0 0.0
    %1805 = vmatprep.subr.mxu0 0.0
    %1806 = vmatpush1.msra.mxu0 0.0
    %1807 = vmatprep.subr.mxu0 0.0
    %1808 = vmatpush1.msra.mxu0 0.0
    %1809 = vmatprep.subr.mxu0 0.0
    %1810 = vmatpush1.msra.mxu0 0.0
    %1811 = vmatprep.subr.mxu0 0.0
    %1812 = vmatpush1.msra.mxu0 0.0
    %1813 = vmatprep.subr.mxu0 0.0
    %1814 = vmatpush1.msra.mxu0 0.0
    %1815 = vmatprep.subr.mxu0 0.0
    %1816 = vmatpush1.msra.mxu0 0.0
    %1817 = vmatprep.subr.mxu0 0.0
    %1818 = vmatpush1.msra.mxu0 0.0
    %1819 = vmatprep.subr.mxu0 0.0
    %1820 = vmatpush1.msra.mxu0 0.0
    %1821 = vmatprep.subr.mxu0 0.0
    %1822 = vmatpush1.msra.mxu0 0.0
    %1823 = vmatprep.subr.mxu0 0.0
    %1824 = vmatpush1.msra.mxu0 0.0
    %1825 = vmatprep.subr.mxu0 0.0
    %1826 = vmatpush1.msra.mxu0 0.0
    %1827 = vmatprep.subr.mxu0 0.0
    %1828 = vmatpush1.msra.mxu0 0.0
    %1829 = vmatprep.subr.mxu0 0.0
    %1830 = vmatpush1.msra.mxu0 0.0
    %1831 = vmatprep.subr.mxu0 0.0
    %1832 = vmatpush1.msra.mxu0 0.0
    %1833 = vmatprep.subr.mxu0 0.0
    %1834 = vmatpush1.msra.mxu0 0.0
    %1835 = vmatprep.subr.mxu0 0.0
    %1836 = vmatpush1.msra.mxu0 0.0
    %1837 = vmatprep.subr.mxu0 0.0
    %1838 = vmatpush1.msra.mxu0 0.0
    %1839 = vmatprep.mubr.f32.mxu0 0.0
    %1840 = vmatmul.mubr.f32.gmra.mrb[0].mxu0 %v1773
    %v1841 = vpop.f32.mrb[0].mxu0
    %v1842 = vadd.f32 0.0, %v1841
    %v1843 = vpop.f32.mrb[0].mxu0
    %v1844 = vadd.f32 0.0, %v1843
    %1845 = vdwg.mxu0
    %v1846 = vadd.f32 %v1743, %v1844
    %v1847 = vadd.f32 %v1846, %v1043
    %v1848 = vadd.f32 %v1847, %v1842
    %v1849 = vxor.u32 %v1848, 2147483648
    %v1850 = vmul.f32 %v1849, 1.442695
    %v1851 = vpow.pop %v1850
    %v1852 = vadd.f32 %v1851, 1.0
    %v1853 = vrcp.pop %v1852
    %v1854 = vmul.f32 1.0, %v1853
    %1856 = vrot.lane.b32.xlu0 %v1848, 32
    %v1857 = vpop.permute.xlu0 %1856
    %v1859 = vmul.f32 %v1854, %v1857
    %1861 = vrot.lane.b32.xlu0 %v1859, 64
    %v1862 = vpop.permute.xlu0 %1861
    %v1864 = vadd.f32 %v1848, %v1862
    %v1865 = vtanh.pop %v1864
    %v1866 = vsub.f32 1.0, %v1854
    %1868 = vrot.lane.b32.xlu0 %v1865, 96
    %v1869 = vpop.permute.xlu0 %1868
    %v1871 = vmul.f32 %v1866, %v1869
    %v1872 = vmul.f32 %v1854, %v1769
    %v1873 = vadd.f32 %v1871, %v1872
    %v1874 = vld [vmem:[#allocation11] sm:$0xff]
    %v1875 = vld [vmem:[#allocation11 + $0x8] sm:$0xff]
    %v1876 = vld [vmem:[#allocation11 + $0x10] sm:$0xff]
    %v1877 = vld [vmem:[#allocation11 + $0x18] sm:$0xff]
    %v1878 = vld [vmem:[%s8] sm:$0x1]
    %v1879 = vrot.slane %v1249, 6
    %v1881 = vrot.slane %v1353, 4
    %v1883 = vrot.slane %v1457, 2
    %v1885 = vrot.slane %v1665, 6
    %v1887 = vrot.slane %v1769, 4
    %v1890 = vrot.slane %v1873, 2
    %vm1892 = vcmask 1041408
    %v1893 = vsel %vm1892, %v1145, %v1879
    %vm1894 = vcmask 1043456
    %v1895 = vsel %vm1894, %v1893, %v1881
    %vm1896 = vcmask 1045504
    %v1897 = vsel %vm1896, %v1895, %v1883
    %v1898 = vsel %vm1892, %v1561, %v1885
    %v1899 = vsel %vm1894, %v1898, %v1887
    %v1900 = vsel %vm1896, %v1899, %v1890
    %v1902 = vlaneseq
    %v1903 = vshrl.u32 %v1902, 7
    %v1904 = vsub.s32 0, %v1903
    %v1905 = vrot.slane %v1878, %v1904
    %1909 = vrot.lane.b32.xlu0 %v1897, 96
    %v1910 = vpop.permute.xlu0 %1909
    %1911 = vrot.lane.b32.xlu0 %v1900, 96
    %v1912 = vpop.permute.xlu0 %1911
    %v1913 = vsel %vm401, %v1910, 0
    %v1915 = vsel %vm401, %v1912, 0
    %1917 = vmatprep.subr.mxu0 0.0
    %1918 = vmatpush1.msra.mxu0 %v1874
    %1919 = vmatprep.subr.mxu0 0.0
    %1920 = vmatpush1.msra.mxu0 %v1875
    %1921 = vmatprep.subr.mxu0 0.0
    %1922 = vmatpush1.msra.mxu0 %v1876
    %1923 = vmatprep.subr.mxu0 0.0
    %1924 = vmatpush1.msra.mxu0 %v1877
    %1925 = vmatprep.subr.mxu0 0.0
    %1926 = vmatpush1.msra.mxu0 0.0
    %1927 = vmatprep.subr.mxu0 0.0
    %1928 = vmatpush1.msra.mxu0 0.0
    %1929 = vmatprep.subr.mxu0 0.0
    %1930 = vmatpush1.msra.mxu0 0.0
    %1931 = vmatprep.subr.mxu0 0.0
    %1932 = vmatpush1.msra.mxu0 0.0
    %1933 = vmatprep.subr.mxu0 0.0
    %1934 = vmatpush1.msra.mxu0 0.0
    %1935 = vmatprep.subr.mxu0 0.0
    %1936 = vmatpush1.msra.mxu0 0.0
    %1937 = vmatprep.subr.mxu0 0.0
    %1938 = vmatpush1.msra.mxu0 0.0
    %1939 = vmatprep.subr.mxu0 0.0
    %1940 = vmatpush1.msra.mxu0 0.0
    %1941 = vmatprep.subr.mxu0 0.0
    %1942 = vmatpush1.msra.mxu0 0.0
    %1943 = vmatprep.subr.mxu0 0.0
    %1944 = vmatpush1.msra.mxu0 0.0
    %1945 = vmatprep.subr.mxu0 0.0
    %1946 = vmatpush1.msra.mxu0 0.0
    %1947 = vmatprep.subr.mxu0 0.0
    %1948 = vmatpush1.msra.mxu0 0.0
    %1949 = vmatprep.subr.mxu0 0.0
    %1950 = vmatpush1.msra.mxu0 0.0
    %1951 = vmatprep.subr.mxu0 0.0
    %1952 = vmatpush1.msra.mxu0 0.0
    %1953 = vmatprep.subr.mxu0 0.0
    %1954 = vmatpush1.msra.mxu0 0.0
    %1955 = vmatprep.subr.mxu0 0.0
    %1956 = vmatpush1.msra.mxu0 0.0
    %1957 = vmatprep.subr.mxu0 0.0
    %1958 = vmatpush1.msra.mxu0 0.0
    %1959 = vmatprep.subr.mxu0 0.0
    %1960 = vmatpush1.msra.mxu0 0.0
    %1961 = vmatprep.subr.mxu0 0.0
    %1962 = vmatpush1.msra.mxu0 0.0
    %1963 = vmatprep.subr.mxu0 0.0
    %1964 = vmatpush1.msra.mxu0 0.0
    %1965 = vmatprep.subr.mxu0 0.0
    %1966 = vmatpush1.msra.mxu0 0.0
    %1967 = vmatprep.subr.mxu0 0.0
    %1968 = vmatpush1.msra.mxu0 0.0
    %1969 = vmatprep.subr.mxu0 0.0
    %1970 = vmatpush1.msra.mxu0 0.0
    %1971 = vmatprep.subr.mxu0 0.0
    %1972 = vmatpush1.msra.mxu0 0.0
    %1973 = vmatprep.subr.mxu0 0.0
    %1974 = vmatpush1.msra.mxu0 0.0
    %1975 = vmatprep.subr.mxu0 0.0
    %1976 = vmatpush1.msra.mxu0 0.0
    %1977 = vmatprep.subr.mxu0 0.0
    %1978 = vmatpush1.msra.mxu0 0.0
    %1979 = vmatprep.subr.mxu0 0.0
    %1980 = vmatpush1.msra.mxu0 0.0
    %1981 = vmatprep.mubr.f32.mxu0 0.0
    %1982 = vmatmul.mubr.f32.gmra.mrb[0].mxu0 %v1913
    %v1983 = vpop.f32.mrb[0].mxu0
    %v1984 = vadd.f32 %v1905, %v1983
    %v1985 = vpop.f32.mrb[0].mxu0
    %1986 = vmatprep.mubr.f32.mxu0 0.0
    %1987 = vmatmul.mubr.f32.gmra.mrb[0].mxu0 %v1915
    %v1988 = vpop.f32.mrb[0].mxu0
    %v1989 = vadd.f32 %v1905, %v1988
    %v1990 = vpop.f32.mrb[0].mxu0
    %1991 = vdwg.mxu0
    %v1992 = vadd.f32 %v287, %v1984
    %v1994 = vrot.slane %v1984, 2
    %v1996 = vadd.f32 %v1992, %v1994
    %v1997 = vrot.slane %v1984, 4
    %v1999 = vadd.f32 %v1996, %v1997
    %v2000 = vrot.slane %v1984, 6
    %v2002 = vadd.f32 %v1999, %v2000
    %v2003 = vadd.f32 %v2002, %v1989
    %v2005 = vrot.slane %v1989, 2
    %v2007 = vadd.f32 %v2003, %v2005
    %v2008 = vrot.slane %v1989, 4
    %v2010 = vadd.f32 %v2007, %v2008
    %v2011 = vrot.slane %v1989, 6
    %v2013 = vadd.f32 %v2010, %v2011
    %2015 = vrot.lane.b32.xlu0 %v1996, 64
    %v2016 = vpop.permute.xlu0 %2015
    %2019 = vrot.lane.b32.xlu0 %v2002, 64
    %v2020 = vpop.permute.xlu0 %2019
    %2023 = vrot.lane.b32.xlu0 %v2007, 64
    %v2024 = vpop.permute.xlu0 %2023
    %2027 = vrot.lane.b32.xlu0 %v2013, 64
    %v2028 = vpop.permute.xlu0 %2027
    %v2030 = vsel %vm131, %v1992, %v2016
    %v2031 = vsel %vm131, %v1999, %v2020
    %v2032 = vsel %vm131, %v2003, %v2024
    %v2033 = vsel %vm131, %v2010, %v2028
    %v2038 = vcombine.low %v2030, %v2031
    %v2039 = vcombine.low %v2032, %v2033
    %v2041 = vunpack.c.l.s4 1983009808
    %v2042 = vunpack.c.0.s8 %v2041
    %v2043 = vlaneseq
    %v2044 = vshrl.u32 %v2043, 7
    %v2045 = vsub.s32 %v2042, %v2044
    %v2046 = vrot.slane %v2038, %v2045
    %v2048 = vunpack.c.l.s4 1983009808
    %v2049 = vunpack.c.0.s8 %v2048
    %v2050 = vlaneseq
    %v2051 = vshrl.u32 %v2050, 7
    %v2052 = vsub.s32 %v2049, %v2051
    %v2053 = vrot.slane %v2039, %v2052
    %v2054 = vcombine.low %v2046, %v2053
    %2056 = vst [vmem:[#allocation13] sm:$0xff] %v2054
    // Predicated region
    $region62: #{tpu_custom_call.1} parent=1 // pred_check
      _
    $region63: #{tpu_custom_call.1} parent=1 // pred_check_branch
      %2058 = sbr.rel (0) target = $region65
    $region64: #{tpu_custom_call.1} parent=1 // pred_region
      %s2060 = ssub.s32 128, 128
      %2061 = vsyncadd [#allocation4], %s2060
      %s2063 = sshll.u32 [#allocation13], 4
      %s2064 = int_to_ptr.vmem [resolvable:$true] %s2063
      %2066 = dma.vmem_to_hbm [thread:$0]  %s2064, 128, %s9, [#allocation4]
    $region65: #{tpu_custom_call.1} parent=1 // pred_fallthru
      _
    // Predicated region
    $region66: #{tpu_custom_call.1} parent=1 // pred_check
      _
    $region67: #{tpu_custom_call.1} parent=1 // pred_check_branch
      %2068 = sbr.rel (0) target = $region69
    $region68: #{tpu_custom_call.1} parent=1 // pred_region
      %2069 = dma.done [#allocation4], 128
    $region69: #{tpu_custom_call.1} parent=1 // pred_fallthru
      _
    %2070 = vsyncpa [#allocation3], 1
    %2071 = vsyncpa [#allocation6], 1
    %2072 = vsyncpa [#allocation9], 1
    %2073 = vsyncpa [#allocation12], 1
    %2074 = vsyncpa [#allocation4], 1

</llo_original>
